<compile_context>
chip_gen: v7x
topology: tpu7x:2x2x1
jax: 0.10.0
libtpu: 0.0.40
codegen_flags: <defaults>
</compile_context>

<pallas_src>
import jax
import jax.numpy as jnp
from jax import lax
from jax.experimental import pallas as pl
from jax.experimental.pallas import tpu as pltpu

STATE_DIM = 75
ACTION_DIM = 5
OUTPUT_DIM = 32
HIDDEN_DIM = 128
OUT2 = 2 * OUTPUT_DIM            # 64
OUT_PAD = 128                    # lane-dense padded output width
INPUT_DIM = 2 * STATE_DIM + ACTION_DIM   # 155

_BN_EPS = 1e-5
_LN_EPS = 1e-5
_LEAKY_SLOPE = 0.01
_MAX_TILE = 1024                 # batch-tile rows (review: 1024-2048 row tiles)
_NUM_PHASES = 3                  # one stats phase per BatchNorm layer

# Packed affine params -- one (8, 128) f32 array (one vreg):
#   row 0: bn1 gamma (128)        row 1: bn1 beta (128)
#   row 2: bn2 gamma (32 | 0)     row 3: bn2 beta (32 | 0)
#   row 4: ln  gamma (32 | 0)     row 5: ln  beta (32 | 0)
#   row 6: bn3 gamma (64 | 0)     row 7: bn3 beta (64 | 0)
#
# Stats accumulator (kernel-1 output, 8x128 f32):
#   rows 0-1: sum / sumsq of h  (pre-BN1, 128 features)
#   rows 2-3: sum / sumsq of e  (pre-BN2, 32 features, lanes 0:32)
#   rows 4-5: sum / sumsq of o  (pre-BN3, 64 real features, padded cols are 0)


def _round_up(x, m):
    return ((x + m - 1) // m) * m


def _lrelu(x):
    return jnp.where(x >= 0, x, _LEAKY_SLOPE * x)


def _dot(a, b):
    return jnp.dot(a, b, preferred_element_type=jnp.float32)


def _bn_apply(x, ssum, ssq, gamma, beta, inv_n):
    # Training-mode BatchNorm from single-sweep statistics.
    mu = ssum * inv_n
    var = jnp.maximum(ssq * inv_n - mu * mu, 0.0)
    return (x - mu) * lax.rsqrt(var + _BN_EPS) * gamma + beta


def _stage1(ls, s, a, w1a, w1b, w1c):
    # encoder[0]: Linear(155 -> 128); concat folded into three partial dots.
    # Bias omitted: cancelled exactly by the following training-mode BN.
    return _dot(ls, w1a) + _dot(s, w1b) + _dot(a, w1c)


def _stage2(h, stats, pk, w2, inv_n):
    # encoder[1] BatchNorm1d(128) + encoder[2] LeakyReLU + encoder[3] Linear(128 -> 32)
    hn = _lrelu(_bn_apply(h, stats[0:1, :], stats[1:2, :],
                          pk[0:1, :], pk[1:2, :], inv_n))
    return _dot(hn.astype(jnp.bfloat16), w2)


def _stage3(e, stats, pk, w3, inv_n):
    # encoder[4] BatchNorm1d(32) + encoder[5] LeakyReLU + LayerNorm(32)
    en = _lrelu(_bn_apply(e, stats[2:3, :OUTPUT_DIM], stats[3:4, :OUTPUT_DIM],
                          pk[2:3, :OUTPUT_DIM], pk[3:4, :OUTPUT_DIM], inv_n))
    mu = jnp.mean(en, axis=-1, keepdims=True)
    var = jnp.mean((en - mu) ** 2, axis=-1, keepdims=True)
    eln = (en - mu) * lax.rsqrt(var + _LN_EPS) * pk[4:5, :OUTPUT_DIM] \
        + pk[5:6, :OUTPUT_DIM]
    # output_layer: Linear(32 -> 64), zero-padded to 128 lanes -> lane-dense store.
    return _dot(eln.astype(jnp.bfloat16), w3)


def _stage4(o, stats, pk, inv_n):
    # output_bn: BatchNorm1d(64).  Padded columns: stats and affine are zero,
    # so the padded output columns are exactly zero (no NaN/Inf).
    return _bn_apply(o, stats[4:5, :], stats[5:6, :],
                     pk[6:7, :], pk[7:8, :], inv_n)


def _make_stats_kernel(tile, n_valid, inv_n):
    def stats_kernel(ls_ref, s_ref, a_ref, w1a_ref, w1b_ref, w1c_ref,
                     w2_ref, w3_ref, pk_ref, stats_ref):
        ph = pl.program_id(0)   # BN-layer phase (0, 1, 2)
        t = pl.program_id(1)    # batch tile

        @pl.when(jnp.logical_and(ph == 0, t == 0))
        def _init():
            stats_ref[...] = jnp.zeros_like(stats_ref)

        pk = pk_ref[...]
        stats = stats_ref[...]

        # Row-validity mask: zero-padded batch rows must not pollute the
        # cross-tile BatchNorm statistics.
        rows = lax.broadcasted_iota(jnp.int32, (tile, 1), 0) + t * tile
        vmask = (rows < n_valid).astype(jnp.float32)

        h = _stage1(ls_ref[...], s_ref[...], a_ref[...],
                    w1a_ref[...], w1b_ref[...], w1c_ref[...])

        @pl.when(ph == 0)
        def _acc1():
            hm = h * vmask
            stats_ref[0:1, :] = stats_ref[0:1, :] + jnp.sum(hm, axis=0, keepdims=True)
            stats_ref[1:2, :] = stats_ref[1:2, :] + jnp.sum(hm * hm, axis=0, keepdims=True)

        # Speculative straight-line compute: at ph == 0 the later stats rows are
        # still zero so e / o below are garbage, but their accumulation guards
        # are off and the kernel is HBM-bound (MXU slack), so this keeps the
        # control flow flat and cheap.
        e = _stage2(h, stats, pk, w2_ref[...], inv_n)

        @pl.when(ph == 1)
        def _acc2():
            em = e * vmask
            stats_ref[2:3, :OUTPUT_DIM] = (stats_ref[2:3, :OUTPUT_DIM]
                                           + jnp.sum(em, axis=0, keepdims=True))
            stats_ref[3:4, :OUTPUT_DIM] = (stats_ref[3:4, :OUTPUT_DIM]
                                           + jnp.sum(em * em, axis=0, keepdims=True))

        o = _stage3(e, stats, pk, w3_ref[...], inv_n)

        @pl.when(ph == 2)
        def _acc3():
            om = o * vmask
            stats_ref[4:5, :] = stats_ref[4:5, :] + jnp.sum(om, axis=0, keepdims=True)
            stats_ref[5:6, :] = stats_ref[5:6, :] + jnp.sum(om * om, axis=0, keepdims=True)

    return stats_kernel


def _make_apply_kernel(inv_n):
    def apply_kernel(ls_ref, s_ref, a_ref, w1a_ref, w1b_ref, w1c_ref,
                     w2_ref, w3_ref, pk_ref, stats_ref, out_ref):
        pk = pk_ref[...]
        stats = stats_ref[...]
        h = _stage1(ls_ref[...], s_ref[...], a_ref[...],
                    w1a_ref[...], w1b_ref[...], w1c_ref[...])
        e = _stage2(h, stats, pk, w2_ref[...], inv_n)
        o = _stage3(e, stats, pk, w3_ref[...], inv_n)
        out_ref[...] = _stage4(o, stats, pk, inv_n)

    return apply_kernel


def init_params(key):
    """PyTorch-like init.  Kernel consumes bf16 weights + packed f32 affines;
    f32 biases / per-layer gammas are kept only for the pure-JAX reference."""
    ks = jax.random.split(key, 6)

    def lin(kw, kb, fan_in, fan_out):
        bound = 1.0 / jnp.sqrt(fan_in)
        w = jax.random.uniform(kw, (fan_in, fan_out), jnp.float32, -bound, bound)
        b = jax.random.uniform(kb, (1, fan_out), jnp.float32, -bound, bound)
        return w, b

    w1, b1 = lin(ks[0], ks[1], INPUT_DIM, HIDDEN_DIM)
    w2, b2 = lin(ks[2], ks[3], HIDDEN_DIM, OUTPUT_DIM)
    w3, b3 = lin(ks[4], ks[5], OUTPUT_DIM, OUT2)

    g1 = jnp.ones((HIDDEN_DIM,), jnp.float32)
    be1 = jnp.zeros((HIDDEN_DIM,), jnp.float32)
    g2 = jnp.ones((OUTPUT_DIM,), jnp.float32)
    be2 = jnp.zeros((OUTPUT_DIM,), jnp.float32)
    lng = jnp.ones((OUTPUT_DIM,), jnp.float32)
    lnb = jnp.zeros((OUTPUT_DIM,), jnp.float32)
    g3 = jnp.ones((OUT2,), jnp.float32)
    be3 = jnp.zeros((OUT2,), jnp.float32)

    packed = jnp.zeros((8, 128), jnp.float32)
    packed = packed.at[0, :HIDDEN_DIM].set(g1)
    packed = packed.at[1, :HIDDEN_DIM].set(be1)
    packed = packed.at[2, :OUTPUT_DIM].set(g2)
    packed = packed.at[3, :OUTPUT_DIM].set(be2)
    packed = packed.at[4, :OUTPUT_DIM].set(lng)
    packed = packed.at[5, :OUTPUT_DIM].set(lnb)
    packed = packed.at[6, :OUT2].set(g3)
    packed = packed.at[7, :OUT2].set(be3)

    # Zero-pad output-layer weight to 128 lanes (lane-dense output store).
    w3p = jnp.zeros((OUTPUT_DIM, OUT_PAD), jnp.float32).at[:, :OUT2].set(w3)

    return dict(
        # kernel inputs (bf16 streaming dtype)
        w1a=w1[:STATE_DIM].astype(jnp.bfloat16),
        w1b=w1[STATE_DIM:2 * STATE_DIM].astype(jnp.bfloat16),
        w1c=w1[2 * STATE_DIM:].astype(jnp.bfloat16),
        w2=w2.astype(jnp.bfloat16),
        w3p=w3p.astype(jnp.bfloat16),
        packed=packed,
        # reference-only params (biases cancel under training-mode BN, so the
        # kernel never consumes them)
        b1=b1, b2=b2, b3=b3,
        g1=g1, be1=be1, g2=g2, be2=be2, lng=lng, lnb=lnb, g3=g3, be3=be3,
    )


def proxy_encoder_forward(last_states, states, last_actions, params, *,
                          max_tile=_MAX_TILE):
    batch = last_states.shape[0]

    # Stream activations as bf16 (halves HBM bytes on this mem-bound kernel);
    # accumulation and all BN/LN/LeakyReLU math stays f32 inside the kernels.
    ls = last_states.astype(jnp.bfloat16)
    s = states.astype(jnp.bfloat16)
    a = last_actions.astype(jnp.bfloat16)

    # Batch tiling: tile is a multiple of 16 (bf16 sublane packing); the batch
    # is zero-padded to a whole number of tiles and padded rows are masked out
    # of the BatchNorm statistics in the stats kernel.
    b16 = _round_up(batch, 16)
    tile = min(max_tile, b16)
    b_pad = _round_up(b16, tile)
    if b_pad != batch:
        pad = ((0, b_pad - batch), (0, 0))
        ls, s, a = jnp.pad(ls, pad), jnp.pad(s, pad), jnp.pad(a, pad)
    num_tiles = b_pad // tile

    inv_n = 1.0 / float(batch)
    weights = (params["w1a"], params["w1b"], params["w1c"],
               params["w2"], params["w3p"], params["packed"])
    w_shapes = [(STATE_DIM, HIDDEN_DIM), (STATE_DIM, HIDDEN_DIM),
                (ACTION_DIM, HIDDEN_DIM), (HIDDEN_DIM, OUTPUT_DIM),
                (OUTPUT_DIM, OUT_PAD), (8, 128)]

    # Constant index_maps: weights / packed params are DMA'd once and stay
    # VMEM-resident across all grid steps.
    def const2(p, t):
        return (0, 0)

    def const1(t):
        return (0, 0)

    # ---- Pass 1: cross-tile BatchNorm statistics (sum / sumsq per feature),
    # one phase per BN layer.  Output block is a sequential accumulator, so
    # both grid axes are "arbitrary".
    act_specs_2d = [
        pl.BlockSpec((tile, STATE_DIM), lambda p, t: (t, 0)),
        pl.BlockSpec((tile, STATE_DIM), lambda p, t: (t, 0)),
        pl.BlockSpec((tile, ACTION_DIM), lambda p, t: (t, 0)),
    ]
    w_specs_2d = [pl.BlockSpec(shp, const2) for shp in w_shapes]

    stats = pl.pallas_call(
        _make_stats_kernel(tile, batch, inv_n),
        out_shape=jax.ShapeDtypeStruct((8, 128), jnp.float32),
        grid=(_NUM_PHASES, num_tiles),
        in_specs=act_specs_2d + w_specs_2d,
        out_specs=pl.BlockSpec((8, 128), const2),
        compiler_params=pltpu.CompilerParams(
            dimension_semantics=("arbitrary", "arbitrary")),
    )(ls, s, a, *weights)

    # ---- Pass 2: normalize / apply.  Tiles are independent -> "parallel"
    # (shards across both TensorCores on v7x).  Lane-dense (tile, 128) output.
    act_specs_1d = [
        pl.BlockSpec((tile, STATE_DIM), lambda t: (t, 0)),
        pl.BlockSpec((tile, STATE_DIM), lambda t: (t, 0)),
        pl.BlockSpec((tile, ACTION_DIM), lambda t: (t, 0)),
    ]
    w_specs_1d = [pl.BlockSpec(shp, const1) for shp in w_shapes]
    stats_spec = pl.BlockSpec((8, 128), const1)

    out = pl.pallas_call(
        _make_apply_kernel(inv_n),
        out_shape=jax.ShapeDtypeStruct((b_pad, OUT_PAD), jnp.float32),
        grid=(num_tiles,),
        in_specs=act_specs_1d + w_specs_1d + [stats_spec],
        out_specs=pl.BlockSpec((tile, OUT_PAD), lambda t: (t, 0)),
        compiler_params=pltpu.CompilerParams(
            dimension_semantics=("parallel",)),
    )(ls, s, a, *weights, stats)

    # Free wrapper-side slice of the lane-dense slab + mean / log_var split.
    mean = out[:batch, :OUTPUT_DIM]
    log_var = out[:batch, OUTPUT_DIM:OUT2]
    return mean, log_var


def _reference_forward(last_states, states, last_actions, params):
    """Pure-JAX reference with PyTorch semantics (biases included), mirroring
    the kernel's bf16 streaming dtype so the comparison is tight."""
    f32 = jnp.float32
    x = jnp.concatenate([last_states, states, last_actions], axis=1)
    x = x.astype(jnp.bfloat16).astype(f32)
    w1 = jnp.concatenate(
        [params["w1a"], params["w1b"], params["w1c"]], axis=0).astype(f32)
    w2 = params["w2"].astype(f32)
    w3 = params["w3p"][:, :OUT2].astype(f32)

    def bn(v, g, b):
        mu = jnp.mean(v, axis=0, keepdims=True)
        var = jnp.mean((v - mu) ** 2, axis=0, keepdims=True)
        return (v - mu) / jnp.sqrt(var + _BN_EPS) * g + b

    def lrelu(v):
        return jnp.where(v >= 0, v, _LEAKY_SLOPE * v)

    h = lrelu(bn(x @ w1 + params["b1"], params["g1"], params["be1"]))
    h = h.astype(jnp.bfloat16).astype(f32)
    e = lrelu(bn(h @ w2 + params["b2"], params["g2"], params["be2"]))
    mu = jnp.mean(e, axis=-1, keepdims=True)
    var = jnp.mean((e - mu) ** 2, axis=-1, keepdims=True)
    e = (e - mu) / jnp.sqrt(var + _LN_EPS) * params["lng"] + params["lnb"]
    e = e.astype(jnp.bfloat16).astype(f32)
    o = bn(e @ w3 + params["b3"], params["g3"], params["be3"])
    return o[:, :OUTPUT_DIM], o[:, OUTPUT_DIM:]


if __name__ == "__main__":
    key = jax.random.PRNGKey(0)
    k_params, k_ls, k_s, k_a = jax.random.split(key, 4)

    BATCH = 8
    params = init_params(k_params)
    last_states = jax.random.normal(k_ls, (BATCH, STATE_DIM), jnp.float32)
    states = jax.random.normal(k_s, (BATCH, STATE_DIM), jnp.float32)
    last_actions = jax.random.normal(k_a, (BATCH, ACTION_DIM), jnp.float32)

    fwd = jax.jit(proxy_encoder_forward)
    mean, log_var = fwd(last_states, states, last_actions, params)
    jax.block_until_ready((mean, log_var))

    ref_mean, ref_logvar = _reference_forward(
        last_states, states, last_actions, params)

    assert mean.shape == (BATCH, OUTPUT_DIM) and log_var.shape == (BATCH, OUTPUT_DIM)
    assert bool(jnp.all(jnp.isfinite(mean))) and bool(jnp.all(jnp.isfinite(log_var)))
    assert jnp.allclose(mean, ref_mean, atol=5e-3, rtol=5e-3)
    assert jnp.allclose(log_var, ref_logvar, atol=5e-3, rtol=5e-3)

    print("KERNEL_OK")
</pallas_src>

<mosaic_0001>
module attributes {stable_mosaic.version = 11 : i64} {
  func.func @apply_kernel(%arg0: i32, %arg1: memref<16x75xbf16, #tpu.memory_space<vmem>>, %arg2: memref<16x75xbf16, #tpu.memory_space<vmem>>, %arg3: memref<16x5xbf16, #tpu.memory_space<vmem>>, %arg4: memref<75x128xbf16, #tpu.memory_space<vmem>>, %arg5: memref<75x128xbf16, #tpu.memory_space<vmem>>, %arg6: memref<5x128xbf16, #tpu.memory_space<vmem>>, %arg7: memref<128x32xbf16, #tpu.memory_space<vmem>>, %arg8: memref<32x128xbf16, #tpu.memory_space<vmem>>, %arg9: memref<8x128xf32, #tpu.memory_space<vmem>>, %arg10: memref<8x128xf32, #tpu.memory_space<vmem>>, %arg11: memref<16x128xf32, #tpu.memory_space<vmem>>) attributes {dimension_semantics = [#tpu.dimension_semantics<parallel>], iteration_bounds = array<i64: 1>, scalar_prefetch = 0 : i64, scratch_operands = 0 : i64, tpu.core_type = #tpu.core_type<tc>, window_params = [{transform_indices = @transform_0, window_bounds = array<i64: 16, 75>}, {transform_indices = @transform_1, window_bounds = array<i64: 16, 75>}, {transform_indices = @transform_2, window_bounds = array<i64: 16, 5>}, {pipeline_mode = #tpu.pipeline_mode<synchronous>, transform_indices = @transform_3, window_bounds = array<i64: 75, 128>}, {pipeline_mode = #tpu.pipeline_mode<synchronous>, transform_indices = @transform_4, window_bounds = array<i64: 75, 128>}, {pipeline_mode = #tpu.pipeline_mode<synchronous>, transform_indices = @transform_5, window_bounds = array<i64: 5, 128>}, {pipeline_mode = #tpu.pipeline_mode<synchronous>, transform_indices = @transform_6, window_bounds = array<i64: 128, 32>}, {pipeline_mode = #tpu.pipeline_mode<synchronous>, transform_indices = @transform_7, window_bounds = array<i64: 32, 128>}, {pipeline_mode = #tpu.pipeline_mode<synchronous>, transform_indices = @transform_8, window_bounds = array<i64: 8, 128>}, {pipeline_mode = #tpu.pipeline_mode<synchronous>, transform_indices = @transform_9, window_bounds = array<i64: 8, 128>}, {transform_indices = @transform_10, window_bounds = array<i64: 16, 128>}]} {
    %c0 = arith.constant 0 : index
    %c0_0 = arith.constant 0 : index
    %0 = vector.load %arg9[%c0, %c0_0] : memref<8x128xf32, #tpu.memory_space<vmem>>, vector<8x128xf32>
    %c0_1 = arith.constant 0 : index
    %c0_2 = arith.constant 0 : index
    %1 = vector.load %arg10[%c0_1, %c0_2] : memref<8x128xf32, #tpu.memory_space<vmem>>, vector<8x128xf32>
    %c0_3 = arith.constant 0 : index
    %c0_4 = arith.constant 0 : index
    %2 = vector.load %arg1[%c0_3, %c0_4] : memref<16x75xbf16, #tpu.memory_space<vmem>>, vector<16x75xbf16>
    %c0_5 = arith.constant 0 : index
    %c0_6 = arith.constant 0 : index
    %3 = vector.load %arg2[%c0_5, %c0_6] : memref<16x75xbf16, #tpu.memory_space<vmem>>, vector<16x75xbf16>
    %c0_7 = arith.constant 0 : index
    %c0_8 = arith.constant 0 : index
    %4 = vector.load %arg3[%c0_7, %c0_8] : memref<16x5xbf16, #tpu.memory_space<vmem>>, vector<16x5xbf16>
    %c0_9 = arith.constant 0 : index
    %c0_10 = arith.constant 0 : index
    %5 = vector.load %arg4[%c0_9, %c0_10] : memref<75x128xbf16, #tpu.memory_space<vmem>>, vector<75x128xbf16>
    %c0_11 = arith.constant 0 : index
    %c0_12 = arith.constant 0 : index
    %6 = vector.load %arg5[%c0_11, %c0_12] : memref<75x128xbf16, #tpu.memory_space<vmem>>, vector<75x128xbf16>
    %c0_13 = arith.constant 0 : index
    %c0_14 = arith.constant 0 : index
    %7 = vector.load %arg6[%c0_13, %c0_14] : memref<5x128xbf16, #tpu.memory_space<vmem>>, vector<5x128xbf16>
    %cst = arith.constant dense<0.000000e+00> : vector<16x128xf32>
    %8 = tpu.matmul %2, %5, %cst {dimension_numbers = #tpu.dot_dimension_numbers<[1], [0], [0], [1], [0, 0, 1, 1], [], []>} : vector<16x75xbf16>, vector<75x128xbf16>, vector<16x128xf32> -> vector<16x128xf32>
    %cst_15 = arith.constant dense<0.000000e+00> : vector<16x128xf32>
    %9 = tpu.matmul %3, %6, %cst_15 {dimension_numbers = #tpu.dot_dimension_numbers<[1], [0], [0], [1], [0, 0, 1, 1], [], []>} : vector<16x75xbf16>, vector<75x128xbf16>, vector<16x128xf32> -> vector<16x128xf32>
    %10 = arith.addf %8, %9 : vector<16x128xf32>
    %cst_16 = arith.constant dense<0.000000e+00> : vector<16x128xf32>
    %11 = tpu.matmul %4, %7, %cst_16 {dimension_numbers = #tpu.dot_dimension_numbers<[1], [0], [0], [1], [0, 0, 1, 1], [], []>} : vector<16x5xbf16>, vector<5x128xbf16>, vector<16x128xf32> -> vector<16x128xf32>
    %12 = arith.addf %10, %11 : vector<16x128xf32>
    %c0_17 = arith.constant 0 : index
    %c0_18 = arith.constant 0 : index
    %13 = vector.load %arg7[%c0_17, %c0_18] : memref<128x32xbf16, #tpu.memory_space<vmem>>, vector<128x32xbf16>
    %14 = vector.extract_strided_slice %1 {offsets = [0, 0], sizes = [1, 128], strides = [1, 1]} : vector<8x128xf32> to vector<1x128xf32>
    %15 = vector.extract_strided_slice %1 {offsets = [1, 0], sizes = [1, 128], strides = [1, 1]} : vector<8x128xf32> to vector<1x128xf32>
    %16 = vector.extract_strided_slice %0 {offsets = [0, 0], sizes = [1, 128], strides = [1, 1]} : vector<8x128xf32> to vector<1x128xf32>
    %17 = vector.extract_strided_slice %0 {offsets = [1, 0], sizes = [1, 128], strides = [1, 1]} : vector<8x128xf32> to vector<1x128xf32>
    %cst_19 = arith.constant 1.250000e-01 : f32
    %18 = vector.broadcast %cst_19 : f32 to vector<1x128xf32>
    %19 = arith.mulf %14, %18 : vector<1x128xf32>
    %cst_20 = arith.constant 1.250000e-01 : f32
    %20 = vector.broadcast %cst_20 : f32 to vector<1x128xf32>
    %21 = arith.mulf %15, %20 : vector<1x128xf32>
    %22 = arith.mulf %19, %19 : vector<1x128xf32>
    %23 = arith.subf %21, %22 : vector<1x128xf32>
    %cst_21 = arith.constant 0.000000e+00 : f32
    %24 = vector.broadcast %cst_21 : f32 to vector<1x128xf32>
    %25 = arith.maximumf %23, %24 : vector<1x128xf32>
    %26 = vector.broadcast %19 : vector<1x128xf32> to vector<16x128xf32>
    %27 = arith.subf %12, %26 : vector<16x128xf32>
    %cst_22 = arith.constant 9.99999974E-6 : f32
    %28 = vector.broadcast %cst_22 : f32 to vector<1x128xf32>
    %29 = arith.addf %25, %28 : vector<1x128xf32>
    %30 = math.rsqrt %29 : vector<1x128xf32>
    %31 = vector.broadcast %30 : vector<1x128xf32> to vector<16x128xf32>
    %32 = arith.mulf %27, %31 : vector<16x128xf32>
    %33 = vector.broadcast %16 : vector<1x128xf32> to vector<16x128xf32>
    %34 = arith.mulf %32, %33 : vector<16x128xf32>
    %35 = vector.broadcast %17 : vector<1x128xf32> to vector<16x128xf32>
    %36 = arith.addf %34, %35 : vector<16x128xf32>
    %cst_23 = arith.constant 0.000000e+00 : f32
    %37 = vector.broadcast %cst_23 : f32 to vector<16x128xf32>
    %38 = arith.cmpf oge, %36, %37 : vector<16x128xf32>
    %cst_24 = arith.constant 0.00999999977 : f32
    %39 = vector.broadcast %cst_24 : f32 to vector<16x128xf32>
    %40 = arith.mulf %39, %36 : vector<16x128xf32>
    %41 = arith.select %38, %36, %40 : vector<16x128xi1>, vector<16x128xf32>
    %42 = arith.truncf %41 : vector<16x128xf32> to vector<16x128xbf16>
    %cst_25 = arith.constant dense<0.000000e+00> : vector<16x32xf32>
    %43 = tpu.matmul %42, %13, %cst_25 {dimension_numbers = #tpu.dot_dimension_numbers<[1], [0], [0], [1], [0, 0, 1, 1], [], []>} : vector<16x128xbf16>, vector<128x32xbf16>, vector<16x32xf32> -> vector<16x32xf32>
    %c0_26 = arith.constant 0 : index
    %c0_27 = arith.constant 0 : index
    %44 = vector.load %arg8[%c0_26, %c0_27] : memref<32x128xbf16, #tpu.memory_space<vmem>>, vector<32x128xbf16>
    %45 = vector.extract_strided_slice %1 {offsets = [2, 0], sizes = [1, 32], strides = [1, 1]} : vector<8x128xf32> to vector<1x32xf32>
    %46 = vector.extract_strided_slice %1 {offsets = [3, 0], sizes = [1, 32], strides = [1, 1]} : vector<8x128xf32> to vector<1x32xf32>
    %47 = vector.extract_strided_slice %0 {offsets = [2, 0], sizes = [1, 32], strides = [1, 1]} : vector<8x128xf32> to vector<1x32xf32>
    %48 = vector.extract_strided_slice %0 {offsets = [3, 0], sizes = [1, 32], strides = [1, 1]} : vector<8x128xf32> to vector<1x32xf32>
    %cst_28 = arith.constant 1.250000e-01 : f32
    %49 = vector.broadcast %cst_28 : f32 to vector<1x32xf32>
    %50 = arith.mulf %45, %49 : vector<1x32xf32>
    %cst_29 = arith.constant 1.250000e-01 : f32
    %51 = vector.broadcast %cst_29 : f32 to vector<1x32xf32>
    %52 = arith.mulf %46, %51 : vector<1x32xf32>
    %53 = arith.mulf %50, %50 : vector<1x32xf32>
    %54 = arith.subf %52, %53 : vector<1x32xf32>
    %cst_30 = arith.constant 0.000000e+00 : f32
    %55 = vector.broadcast %cst_30 : f32 to vector<1x32xf32>
    %56 = arith.maximumf %54, %55 : vector<1x32xf32>
    %57 = vector.broadcast %50 : vector<1x32xf32> to vector<16x32xf32>
    %58 = arith.subf %43, %57 : vector<16x32xf32>
    %cst_31 = arith.constant 9.99999974E-6 : f32
    %59 = vector.broadcast %cst_31 : f32 to vector<1x32xf32>
    %60 = arith.addf %56, %59 : vector<1x32xf32>
    %61 = math.rsqrt %60 : vector<1x32xf32>
    %62 = vector.broadcast %61 : vector<1x32xf32> to vector<16x32xf32>
    %63 = arith.mulf %58, %62 : vector<16x32xf32>
    %64 = vector.broadcast %47 : vector<1x32xf32> to vector<16x32xf32>
    %65 = arith.mulf %63, %64 : vector<16x32xf32>
    %66 = vector.broadcast %48 : vector<1x32xf32> to vector<16x32xf32>
    %67 = arith.addf %65, %66 : vector<16x32xf32>
    %cst_32 = arith.constant 0.000000e+00 : f32
    %68 = vector.broadcast %cst_32 : f32 to vector<16x32xf32>
    %69 = arith.cmpf oge, %67, %68 : vector<16x32xf32>
    %cst_33 = arith.constant 0.00999999977 : f32
    %70 = vector.broadcast %cst_33 : f32 to vector<16x32xf32>
    %71 = arith.mulf %70, %67 : vector<16x32xf32>
    %72 = arith.select %69, %67, %71 : vector<16x32xi1>, vector<16x32xf32>
    %cst_34 = arith.constant dense<0.000000e+00> : vector<16xf32>
    %73 = vector.multi_reduction <add>, %72, %cst_34 [1] : vector<16x32xf32> to vector<16xf32>
    %74 = vector.shape_cast %73 : vector<16xf32> to vector<16x1xf32>
    %cst_35 = arith.constant 3.200000e+01 : f32
    %75 = vector.broadcast %cst_35 : f32 to vector<16x1xf32>
    %76 = arith.divf %74, %75 : vector<16x1xf32>
    %77 = vector.broadcast %76 : vector<16x1xf32> to vector<16x32xf32>
    %78 = arith.subf %72, %77 : vector<16x32xf32>
    %79 = arith.mulf %78, %78 : vector<16x32xf32>
    %cst_36 = arith.constant dense<0.000000e+00> : vector<16xf32>
    %80 = vector.multi_reduction <add>, %79, %cst_36 [1] : vector<16x32xf32> to vector<16xf32>
    %81 = vector.shape_cast %80 : vector<16xf32> to vector<16x1xf32>
    %cst_37 = arith.constant 3.200000e+01 : f32
    %82 = vector.broadcast %cst_37 : f32 to vector<16x1xf32>
    %83 = arith.divf %81, %82 : vector<16x1xf32>
    %84 = vector.broadcast %76 : vector<16x1xf32> to vector<16x32xf32>
    %85 = arith.subf %72, %84 : vector<16x32xf32>
    %cst_38 = arith.constant 9.99999974E-6 : f32
    %86 = vector.broadcast %cst_38 : f32 to vector<16x1xf32>
    %87 = arith.addf %83, %86 : vector<16x1xf32>
    %88 = math.rsqrt %87 : vector<16x1xf32>
    %89 = vector.broadcast %88 : vector<16x1xf32> to vector<16x32xf32>
    %90 = arith.mulf %85, %89 : vector<16x32xf32>
    %91 = vector.extract_strided_slice %0 {offsets = [4, 0], sizes = [1, 32], strides = [1, 1]} : vector<8x128xf32> to vector<1x32xf32>
    %92 = vector.broadcast %91 : vector<1x32xf32> to vector<16x32xf32>
    %93 = arith.mulf %90, %92 : vector<16x32xf32>
    %94 = vector.extract_strided_slice %0 {offsets = [5, 0], sizes = [1, 32], strides = [1, 1]} : vector<8x128xf32> to vector<1x32xf32>
    %95 = vector.broadcast %94 : vector<1x32xf32> to vector<16x32xf32>
    %96 = arith.addf %93, %95 : vector<16x32xf32>
    %97 = arith.truncf %96 : vector<16x32xf32> to vector<16x32xbf16>
    %cst_39 = arith.constant dense<0.000000e+00> : vector<16x128xf32>
    %98 = tpu.matmul %97, %44, %cst_39 {dimension_numbers = #tpu.dot_dimension_numbers<[1], [0], [0], [1], [0, 0, 1, 1], [], []>} : vector<16x32xbf16>, vector<32x128xbf16>, vector<16x128xf32> -> vector<16x128xf32>
    %99 = vector.extract_strided_slice %1 {offsets = [4, 0], sizes = [1, 128], strides = [1, 1]} : vector<8x128xf32> to vector<1x128xf32>
    %100 = vector.extract_strided_slice %1 {offsets = [5, 0], sizes = [1, 128], strides = [1, 1]} : vector<8x128xf32> to vector<1x128xf32>
    %101 = vector.extract_strided_slice %0 {offsets = [6, 0], sizes = [1, 128], strides = [1, 1]} : vector<8x128xf32> to vector<1x128xf32>
    %102 = vector.extract_strided_slice %0 {offsets = [7, 0], sizes = [1, 128], strides = [1, 1]} : vector<8x128xf32> to vector<1x128xf32>
    %cst_40 = arith.constant 1.250000e-01 : f32
    %103 = vector.broadcast %cst_40 : f32 to vector<1x128xf32>
    %104 = arith.mulf %99, %103 : vector<1x128xf32>
    %cst_41 = arith.constant 1.250000e-01 : f32
    %105 = vector.broadcast %cst_41 : f32 to vector<1x128xf32>
    %106 = arith.mulf %100, %105 : vector<1x128xf32>
    %107 = arith.mulf %104, %104 : vector<1x128xf32>
    %108 = arith.subf %106, %107 : vector<1x128xf32>
    %cst_42 = arith.constant 0.000000e+00 : f32
    %109 = vector.broadcast %cst_42 : f32 to vector<1x128xf32>
    %110 = arith.maximumf %108, %109 : vector<1x128xf32>
    %111 = vector.broadcast %104 : vector<1x128xf32> to vector<16x128xf32>
    %112 = arith.subf %98, %111 : vector<16x128xf32>
    %cst_43 = arith.constant 9.99999974E-6 : f32
    %113 = vector.broadcast %cst_43 : f32 to vector<1x128xf32>
    %114 = arith.addf %110, %113 : vector<1x128xf32>
    %115 = math.rsqrt %114 : vector<1x128xf32>
    %116 = vector.broadcast %115 : vector<1x128xf32> to vector<16x128xf32>
    %117 = arith.mulf %112, %116 : vector<16x128xf32>
    %118 = vector.broadcast %101 : vector<1x128xf32> to vector<16x128xf32>
    %119 = arith.mulf %117, %118 : vector<16x128xf32>
    %120 = vector.broadcast %102 : vector<1x128xf32> to vector<16x128xf32>
    %121 = arith.addf %119, %120 : vector<16x128xf32>
    %c0_44 = arith.constant 0 : index
    %c0_45 = arith.constant 0 : index
    %122 = vector.load %arg11[%c0_44, %c0_45] : memref<16x128xf32, #tpu.memory_space<vmem>>, vector<16x128xf32>
    tpu.vector_store %arg11[%c0_44, %c0_45], %121 {strides = array<i32>} : memref<16x128xf32, #tpu.memory_space<vmem>>, vector<16x128xf32>,
    return
  }
  func.func @transform_0(%arg0: i32) -> (i32, i32) {
    %c0_i32 = arith.constant 0 : i32
    %c0_i32_0 = arith.constant 0 : i32
    return %arg0, %c0_i32 : i32, i32
  }
  func.func @transform_1(%arg0: i32) -> (i32, i32) {
    %c0_i32 = arith.constant 0 : i32
    %c0_i32_0 = arith.constant 0 : i32
    return %arg0, %c0_i32 : i32, i32
  }
  func.func @transform_2(%arg0: i32) -> (i32, i32) {
    %c0_i32 = arith.constant 0 : i32
    %c0_i32_0 = arith.constant 0 : i32
    return %arg0, %c0_i32 : i32, i32
  }
  func.func @transform_3(%arg0: i32) -> (i32, i32) {
    %c0_i32 = arith.constant 0 : i32
    %c0_i32_0 = arith.constant 0 : i32
    %c0_i32_1 = arith.constant 0 : i32
    return %c0_i32, %c0_i32_0 : i32, i32
  }
  func.func @transform_4(%arg0: i32) -> (i32, i32) {
    %c0_i32 = arith.constant 0 : i32
    %c0_i32_0 = arith.constant 0 : i32
    %c0_i32_1 = arith.constant 0 : i32
    return %c0_i32, %c0_i32_0 : i32, i32
  }
  func.func @transform_5(%arg0: i32) -> (i32, i32) {
    %c0_i32 = arith.constant 0 : i32
    %c0_i32_0 = arith.constant 0 : i32
    %c0_i32_1 = arith.constant 0 : i32
    return %c0_i32, %c0_i32_0 : i32, i32
  }
  func.func @transform_6(%arg0: i32) -> (i32, i32) {
    %c0_i32 = arith.constant 0 : i32
    %c0_i32_0 = arith.constant 0 : i32
    %c0_i32_1 = arith.constant 0 : i32
    return %c0_i32, %c0_i32_0 : i32, i32
  }
  func.func @transform_7(%arg0: i32) -> (i32, i32) {
    %c0_i32 = arith.constant 0 : i32
    %c0_i32_0 = arith.constant 0 : i32
    %c0_i32_1 = arith.constant 0 : i32
    return %c0_i32, %c0_i32_0 : i32, i32
  }
  func.func @transform_8(%arg0: i32) -> (i32, i32) {
    %c0_i32 = arith.constant 0 : i32
    %c0_i32_0 = arith.constant 0 : i32
    %c0_i32_1 = arith.constant 0 : i32
    return %c0_i32, %c0_i32_0 : i32, i32
  }
  func.func @transform_9(%arg0: i32) -> (i32, i32) {
    %c0_i32 = arith.constant 0 : i32
    %c0_i32_0 = arith.constant 0 : i32
    %c0_i32_1 = arith.constant 0 : i32
    return %c0_i32, %c0_i32_0 : i32, i32
  }
  func.func @transform_10(%arg0: i32) -> (i32, i32) {
    %c0_i32 = arith.constant 0 : i32
    %c0_i32_0 = arith.constant 0 : i32
    return %arg0, %c0_i32 : i32, i32
  }
}

module attributes {stable_mosaic.version = 11 : i64} {
  func.func @stats_kernel(%arg0: i32, %arg1: i32, %arg2: memref<16x75xbf16, #tpu.memory_space<vmem>>, %arg3: memref<16x75xbf16, #tpu.memory_space<vmem>>, %arg4: memref<16x5xbf16, #tpu.memory_space<vmem>>, %arg5: memref<75x128xbf16, #tpu.memory_space<vmem>>, %arg6: memref<75x128xbf16, #tpu.memory_space<vmem>>, %arg7: memref<5x128xbf16, #tpu.memory_space<vmem>>, %arg8: memref<128x32xbf16, #tpu.memory_space<vmem>>, %arg9: memref<32x128xbf16, #tpu.memory_space<vmem>>, %arg10: memref<8x128xf32, #tpu.memory_space<vmem>>, %arg11: memref<8x128xf32, #tpu.memory_space<vmem>>) attributes {dimension_semantics = [#tpu.dimension_semantics<arbitrary>, #tpu.dimension_semantics<arbitrary>], iteration_bounds = array<i64: 3, 1>, scalar_prefetch = 0 : i64, scratch_operands = 0 : i64, tpu.core_type = #tpu.core_type<tc>, window_params = [{transform_indices = @transform_0, window_bounds = array<i64: 16, 75>}, {transform_indices = @transform_1, window_bounds = array<i64: 16, 75>}, {transform_indices = @transform_2, window_bounds = array<i64: 16, 5>}, {pipeline_mode = #tpu.pipeline_mode<synchronous>, transform_indices = @transform_3, window_bounds = array<i64: 75, 128>}, {pipeline_mode = #tpu.pipeline_mode<synchronous>, transform_indices = @transform_4, window_bounds = array<i64: 75, 128>}, {pipeline_mode = #tpu.pipeline_mode<synchronous>, transform_indices = @transform_5, window_bounds = array<i64: 5, 128>}, {pipeline_mode = #tpu.pipeline_mode<synchronous>, transform_indices = @transform_6, window_bounds = array<i64: 128, 32>}, {pipeline_mode = #tpu.pipeline_mode<synchronous>, transform_indices = @transform_7, window_bounds = array<i64: 32, 128>}, {pipeline_mode = #tpu.pipeline_mode<synchronous>, transform_indices = @transform_8, window_bounds = array<i64: 8, 128>}, {pipeline_mode = #tpu.pipeline_mode<synchronous>, transform_indices = @transform_9, window_bounds = array<i64: 8, 128>}]} {
    %c0_i32 = arith.constant 0 : i32
    %0 = arith.cmpi eq, %arg0, %c0_i32 : i32
    %c0_i32_0 = arith.constant 0 : i32
    %1 = arith.cmpi eq, %arg1, %c0_i32_0 : i32
    %2 = arith.andi %0, %1 : i1
    %3 = arith.extui %2 : i1 to i32
    %c0_i32_1 = arith.constant 0 : i32
    %4 = arith.cmpi ne, %3, %c0_i32_1 : i32
    scf.if %4 {
      %cst_46 = arith.constant 0.000000e+00 : f32
      %121 = vector.broadcast %cst_46 : f32 to vector<8x128xf32>
      %c0_47 = arith.constant 0 : index
      %c0_48 = arith.constant 0 : index
      %122 = vector.load %arg11[%c0_47, %c0_48] : memref<8x128xf32, #tpu.memory_space<vmem>>, vector<8x128xf32>
      tpu.vector_store %arg11[%c0_47, %c0_48], %121 {strides = array<i32>} : memref<8x128xf32, #tpu.memory_space<vmem>>, vector<8x128xf32>,
    } else {
    }
    %c0 = arith.constant 0 : index
    %c0_2 = arith.constant 0 : index
    %5 = vector.load %arg10[%c0, %c0_2] : memref<8x128xf32, #tpu.memory_space<vmem>>, vector<8x128xf32>
    %c0_3 = arith.constant 0 : index
    %c0_4 = arith.constant 0 : index
    %6 = vector.load %arg11[%c0_3, %c0_4] : memref<8x128xf32, #tpu.memory_space<vmem>>, vector<8x128xf32>
    %7 = tpu.iota {dimensions = array<i32: 0>} : vector<16x1xi32>
    %c16_i32 = arith.constant 16 : i32
    %8 = arith.muli %arg1, %c16_i32 : i32
    %9 = vector.broadcast %8 : i32 to vector<16x1xi32>
    %10 = arith.addi %7, %9 : vector<16x1xi32>
    %c8_i32 = arith.constant 8 : i32
    %11 = vector.broadcast %c8_i32 : i32 to vector<16x1xi32>
    %12 = arith.cmpi slt, %10, %11 : vector<16x1xi32>
    %13 = arith.extui %12 : vector<16x1xi1> to vector<16x1xi32>
    %14 = arith.sitofp %13 : vector<16x1xi32> to vector<16x1xf32>
    %c0_5 = arith.constant 0 : index
    %c0_6 = arith.constant 0 : index
    %15 = vector.load %arg2[%c0_5, %c0_6] : memref<16x75xbf16, #tpu.memory_space<vmem>>, vector<16x75xbf16>
    %c0_7 = arith.constant 0 : index
    %c0_8 = arith.constant 0 : index
    %16 = vector.load %arg3[%c0_7, %c0_8] : memref<16x75xbf16, #tpu.memory_space<vmem>>, vector<16x75xbf16>
    %c0_9 = arith.constant 0 : index
    %c0_10 = arith.constant 0 : index
    %17 = vector.load %arg4[%c0_9, %c0_10] : memref<16x5xbf16, #tpu.memory_space<vmem>>, vector<16x5xbf16>
    %c0_11 = arith.constant 0 : index
    %c0_12 = arith.constant 0 : index
    %18 = vector.load %arg5[%c0_11, %c0_12] : memref<75x128xbf16, #tpu.memory_space<vmem>>, vector<75x128xbf16>
    %c0_13 = arith.constant 0 : index
    %c0_14 = arith.constant 0 : index
    %19 = vector.load %arg6[%c0_13, %c0_14] : memref<75x128xbf16, #tpu.memory_space<vmem>>, vector<75x128xbf16>
    %c0_15 = arith.constant 0 : index
    %c0_16 = arith.constant 0 : index
    %20 = vector.load %arg7[%c0_15, %c0_16] : memref<5x128xbf16, #tpu.memory_space<vmem>>, vector<5x128xbf16>
    %cst = arith.constant dense<0.000000e+00> : vector<16x128xf32>
    %21 = tpu.matmul %15, %18, %cst {dimension_numbers = #tpu.dot_dimension_numbers<[1], [0], [0], [1], [0, 0, 1, 1], [], []>} : vector<16x75xbf16>, vector<75x128xbf16>, vector<16x128xf32> -> vector<16x128xf32>
    %cst_17 = arith.constant dense<0.000000e+00> : vector<16x128xf32>
    %22 = tpu.matmul %16, %19, %cst_17 {dimension_numbers = #tpu.dot_dimension_numbers<[1], [0], [0], [1], [0, 0, 1, 1], [], []>} : vector<16x75xbf16>, vector<75x128xbf16>, vector<16x128xf32> -> vector<16x128xf32>
    %23 = arith.addf %21, %22 : vector<16x128xf32>
    %cst_18 = arith.constant dense<0.000000e+00> : vector<16x128xf32>
    %24 = tpu.matmul %17, %20, %cst_18 {dimension_numbers = #tpu.dot_dimension_numbers<[1], [0], [0], [1], [0, 0, 1, 1], [], []>} : vector<16x5xbf16>, vector<5x128xbf16>, vector<16x128xf32> -> vector<16x128xf32>
    %25 = arith.addf %23, %24 : vector<16x128xf32>
    %c0_i32_19 = arith.constant 0 : i32
    %26 = arith.cmpi eq, %arg0, %c0_i32_19 : i32
    %27 = arith.extui %26 : i1 to i32
    %c0_i32_20 = arith.constant 0 : i32
    %28 = arith.cmpi ne, %27, %c0_i32_20 : i32
    scf.if %28 {
      %121 = vector.broadcast %14 : vector<16x1xf32> to vector<16x128xf32>
      %122 = arith.mulf %25, %121 : vector<16x128xf32>
      %c0_46 = arith.constant 0 : index
      %c0_47 = arith.constant 0 : index
      %123 = vector.load %arg11[%c0_46, %c0_47] : memref<8x128xf32, #tpu.memory_space<vmem>>, vector<1x128xf32>
      %cst_48 = arith.constant dense<0.000000e+00> : vector<128xf32>
      %124 = vector.multi_reduction <add>, %122, %cst_48 [0] : vector<16x128xf32> to vector<128xf32>
      %125 = vector.shape_cast %124 : vector<128xf32> to vector<1x128xf32>
      %126 = arith.addf %123, %125 : vector<1x128xf32>
      %c0_49 = arith.constant 0 : index
      %c0_50 = arith.constant 0 : index
      %127 = vector.load %arg11[%c0_49, %c0_50] : memref<8x128xf32, #tpu.memory_space<vmem>>, vector<1x128xf32>
      tpu.vector_store %arg11[%c0_49, %c0_50], %126 {strides = array<i32>} : memref<8x128xf32, #tpu.memory_space<vmem>>, vector<1x128xf32>,
      %c1 = arith.constant 1 : index
      %c0_51 = arith.constant 0 : index
      %128 = vector.load %arg11[%c1, %c0_51] : memref<8x128xf32, #tpu.memory_space<vmem>>, vector<1x128xf32>
      %129 = arith.mulf %122, %122 : vector<16x128xf32>
      %cst_52 = arith.constant dense<0.000000e+00> : vector<128xf32>
      %130 = vector.multi_reduction <add>, %129, %cst_52 [0] : vector<16x128xf32> to vector<128xf32>
      %131 = vector.shape_cast %130 : vector<128xf32> to vector<1x128xf32>
      %132 = arith.addf %128, %131 : vector<1x128xf32>
      %c1_53 = arith.constant 1 : index
      %c0_54 = arith.constant 0 : index
      %133 = vector.load %arg11[%c1_53, %c0_54] : memref<8x128xf32, #tpu.memory_space<vmem>>, vector<1x128xf32>
      tpu.vector_store %arg11[%c1_53, %c0_54], %132 {strides = array<i32>} : memref<8x128xf32, #tpu.memory_space<vmem>>, vector<1x128xf32>,
    } else {
    }
    %c0_21 = arith.constant 0 : index
    %c0_22 = arith.constant 0 : index
    %29 = vector.load %arg8[%c0_21, %c0_22] : memref<128x32xbf16, #tpu.memory_space<vmem>>, vector<128x32xbf16>
    %30 = vector.extract_strided_slice %6 {offsets = [0, 0], sizes = [1, 128], strides = [1, 1]} : vector<8x128xf32> to vector<1x128xf32>
    %31 = vector.extract_strided_slice %6 {offsets = [1, 0], sizes = [1, 128], strides = [1, 1]} : vector<8x128xf32> to vector<1x128xf32>
    %32 = vector.extract_strided_slice %5 {offsets = [0, 0], sizes = [1, 128], strides = [1, 1]} : vector<8x128xf32> to vector<1x128xf32>
    %33 = vector.extract_strided_slice %5 {offsets = [1, 0], sizes = [1, 128], strides = [1, 1]} : vector<8x128xf32> to vector<1x128xf32>
    %cst_23 = arith.constant 1.250000e-01 : f32
    %34 = vector.broadcast %cst_23 : f32 to vector<1x128xf32>
    %35 = arith.mulf %30, %34 : vector<1x128xf32>
    %cst_24 = arith.constant 1.250000e-01 : f32
    %36 = vector.broadcast %cst_24 : f32 to vector<1x128xf32>
    %37 = arith.mulf %31, %36 : vector<1x128xf32>
    %38 = arith.mulf %35, %35 : vector<1x128xf32>
    %39 = arith.subf %37, %38 : vector<1x128xf32>
    %cst_25 = arith.constant 0.000000e+00 : f32
    %40 = vector.broadcast %cst_25 : f32 to vector<1x128xf32>
    %41 = arith.maximumf %39, %40 : vector<1x128xf32>
    %42 = vector.broadcast %35 : vector<1x128xf32> to vector<16x128xf32>
    %43 = arith.subf %25, %42 : vector<16x128xf32>
    %cst_26 = arith.constant 9.99999974E-6 : f32
    %44 = vector.broadcast %cst_26 : f32 to vector<1x128xf32>
    %45 = arith.addf %41, %44 : vector<1x128xf32>
    %46 = math.rsqrt %45 : vector<1x128xf32>
    %47 = vector.broadcast %46 : vector<1x128xf32> to vector<16x128xf32>
    %48 = arith.mulf %43, %47 : vector<16x128xf32>
    %49 = vector.broadcast %32 : vector<1x128xf32> to vector<16x128xf32>
    %50 = arith.mulf %48, %49 : vector<16x128xf32>
    %51 = vector.broadcast %33 : vector<1x128xf32> to vector<16x128xf32>
    %52 = arith.addf %50, %51 : vector<16x128xf32>
    %cst_27 = arith.constant 0.000000e+00 : f32
    %53 = vector.broadcast %cst_27 : f32 to vector<16x128xf32>
    %54 = arith.cmpf oge, %52, %53 : vector<16x128xf32>
    %cst_28 = arith.constant 0.00999999977 : f32
    %55 = vector.broadcast %cst_28 : f32 to vector<16x128xf32>
    %56 = arith.mulf %55, %52 : vector<16x128xf32>
    %57 = arith.select %54, %52, %56 : vector<16x128xi1>, vector<16x128xf32>
    %58 = arith.truncf %57 : vector<16x128xf32> to vector<16x128xbf16>
    %cst_29 = arith.constant dense<0.000000e+00> : vector<16x32xf32>
    %59 = tpu.matmul %58, %29, %cst_29 {dimension_numbers = #tpu.dot_dimension_numbers<[1], [0], [0], [1], [0, 0, 1, 1], [], []>} : vector<16x128xbf16>, vector<128x32xbf16>, vector<16x32xf32> -> vector<16x32xf32>
    %c1_i32 = arith.constant 1 : i32
    %60 = arith.cmpi eq, %arg0, %c1_i32 : i32
    %61 = arith.extui %60 : i1 to i32
    %c0_i32_30 = arith.constant 0 : i32
    %62 = arith.cmpi ne, %61, %c0_i32_30 : i32
    scf.if %62 {
      %121 = vector.broadcast %14 : vector<16x1xf32> to vector<16x32xf32>
      %122 = arith.mulf %59, %121 : vector<16x32xf32>
      %c2 = arith.constant 2 : index
      %c0_46 = arith.constant 0 : index
      %123 = vector.load %arg11[%c2, %c0_46] : memref<8x128xf32, #tpu.memory_space<vmem>>, vector<1x32xf32>
      %cst_47 = arith.constant dense<0.000000e+00> : vector<32xf32>
      %124 = vector.multi_reduction <add>, %122, %cst_47 [0] : vector<16x32xf32> to vector<32xf32>
      %125 = vector.shape_cast %124 : vector<32xf32> to vector<1x32xf32>
      %126 = arith.addf %123, %125 : vector<1x32xf32>
      %c2_48 = arith.constant 2 : index
      %c0_49 = arith.constant 0 : index
      %127 = vector.load %arg11[%c2_48, %c0_49] : memref<8x128xf32, #tpu.memory_space<vmem>>, vector<1x32xf32>
      tpu.vector_store %arg11[%c2_48, %c0_49], %126 {strides = array<i32>} : memref<8x128xf32, #tpu.memory_space<vmem>>, vector<1x32xf32>,
      %c3 = arith.constant 3 : index
      %c0_50 = arith.constant 0 : index
      %128 = vector.load %arg11[%c3, %c0_50] : memref<8x128xf32, #tpu.memory_space<vmem>>, vector<1x32xf32>
      %129 = arith.mulf %122, %122 : vector<16x32xf32>
      %cst_51 = arith.constant dense<0.000000e+00> : vector<32xf32>
      %130 = vector.multi_reduction <add>, %129, %cst_51 [0] : vector<16x32xf32> to vector<32xf32>
      %131 = vector.shape_cast %130 : vector<32xf32> to vector<1x32xf32>
      %132 = arith.addf %128, %131 : vector<1x32xf32>
      %c3_52 = arith.constant 3 : index
      %c0_53 = arith.constant 0 : index
      %133 = vector.load %arg11[%c3_52, %c0_53] : memref<8x128xf32, #tpu.memory_space<vmem>>, vector<1x32xf32>
      tpu.vector_store %arg11[%c3_52, %c0_53], %132 {strides = array<i32>} : memref<8x128xf32, #tpu.memory_space<vmem>>, vector<1x32xf32>,
    } else {
    }
    %c0_31 = arith.constant 0 : index
    %c0_32 = arith.constant 0 : index
    %63 = vector.load %arg9[%c0_31, %c0_32] : memref<32x128xbf16, #tpu.memory_space<vmem>>, vector<32x128xbf16>
    %64 = vector.extract_strided_slice %6 {offsets = [2, 0], sizes = [1, 32], strides = [1, 1]} : vector<8x128xf32> to vector<1x32xf32>
    %65 = vector.extract_strided_slice %6 {offsets = [3, 0], sizes = [1, 32], strides = [1, 1]} : vector<8x128xf32> to vector<1x32xf32>
    %66 = vector.extract_strided_slice %5 {offsets = [2, 0], sizes = [1, 32], strides = [1, 1]} : vector<8x128xf32> to vector<1x32xf32>
    %67 = vector.extract_strided_slice %5 {offsets = [3, 0], sizes = [1, 32], strides = [1, 1]} : vector<8x128xf32> to vector<1x32xf32>
    %cst_33 = arith.constant 1.250000e-01 : f32
    %68 = vector.broadcast %cst_33 : f32 to vector<1x32xf32>
    %69 = arith.mulf %64, %68 : vector<1x32xf32>
    %cst_34 = arith.constant 1.250000e-01 : f32
    %70 = vector.broadcast %cst_34 : f32 to vector<1x32xf32>
    %71 = arith.mulf %65, %70 : vector<1x32xf32>
    %72 = arith.mulf %69, %69 : vector<1x32xf32>
    %73 = arith.subf %71, %72 : vector<1x32xf32>
    %cst_35 = arith.constant 0.000000e+00 : f32
    %74 = vector.broadcast %cst_35 : f32 to vector<1x32xf32>
    %75 = arith.maximumf %73, %74 : vector<1x32xf32>
    %76 = vector.broadcast %69 : vector<1x32xf32> to vector<16x32xf32>
    %77 = arith.subf %59, %76 : vector<16x32xf32>
    %cst_36 = arith.constant 9.99999974E-6 : f32
    %78 = vector.broadcast %cst_36 : f32 to vector<1x32xf32>
    %79 = arith.addf %75, %78 : vector<1x32xf32>
    %80 = math.rsqrt %79 : vector<1x32xf32>
    %81 = vector.broadcast %80 : vector<1x32xf32> to vector<16x32xf32>
    %82 = arith.mulf %77, %81 : vector<16x32xf32>
    %83 = vector.broadcast %66 : vector<1x32xf32> to vector<16x32xf32>
    %84 = arith.mulf %82, %83 : vector<16x32xf32>
    %85 = vector.broadcast %67 : vector<1x32xf32> to vector<16x32xf32>
    %86 = arith.addf %84, %85 : vector<16x32xf32>
    %cst_37 = arith.constant 0.000000e+00 : f32
    %87 = vector.broadcast %cst_37 : f32 to vector<16x32xf32>
    %88 = arith.cmpf oge, %86, %87 : vector<16x32xf32>
    %cst_38 = arith.constant 0.00999999977 : f32
    %89 = vector.broadcast %cst_38 : f32 to vector<16x32xf32>
    %90 = arith.mulf %89, %86 : vector<16x32xf32>
    %91 = arith.select %88, %86, %90 : vector<16x32xi1>, vector<16x32xf32>
    %cst_39 = arith.constant dense<0.000000e+00> : vector<16xf32>
    %92 = vector.multi_reduction <add>, %91, %cst_39 [1] : vector<16x32xf32> to vector<16xf32>
    %93 = vector.shape_cast %92 : vector<16xf32> to vector<16x1xf32>
    %cst_40 = arith.constant 3.200000e+01 : f32
    %94 = vector.broadcast %cst_40 : f32 to vector<16x1xf32>
    %95 = arith.divf %93, %94 : vector<16x1xf32>
    %96 = vector.broadcast %95 : vector<16x1xf32> to vector<16x32xf32>
    %97 = arith.subf %91, %96 : vector<16x32xf32>
    %98 = arith.mulf %97, %97 : vector<16x32xf32>
    %cst_41 = arith.constant dense<0.000000e+00> : vector<16xf32>
    %99 = vector.multi_reduction <add>, %98, %cst_41 [1] : vector<16x32xf32> to vector<16xf32>
    %100 = vector.shape_cast %99 : vector<16xf32> to vector<16x1xf32>
    %cst_42 = arith.constant 3.200000e+01 : f32
    %101 = vector.broadcast %cst_42 : f32 to vector<16x1xf32>
    %102 = arith.divf %100, %101 : vector<16x1xf32>
    %103 = vector.broadcast %95 : vector<16x1xf32> to vector<16x32xf32>
    %104 = arith.subf %91, %103 : vector<16x32xf32>
    %cst_43 = arith.constant 9.99999974E-6 : f32
    %105 = vector.broadcast %cst_43 : f32 to vector<16x1xf32>
    %106 = arith.addf %102, %105 : vector<16x1xf32>
    %107 = math.rsqrt %106 : vector<16x1xf32>
    %108 = vector.broadcast %107 : vector<16x1xf32> to vector<16x32xf32>
    %109 = arith.mulf %104, %108 : vector<16x32xf32>
    %110 = vector.extract_strided_slice %5 {offsets = [4, 0], sizes = [1, 32], strides = [1, 1]} : vector<8x128xf32> to vector<1x32xf32>
    %111 = vector.broadcast %110 : vector<1x32xf32> to vector<16x32xf32>
    %112 = arith.mulf %109, %111 : vector<16x32xf32>
    %113 = vector.extract_strided_slice %5 {offsets = [5, 0], sizes = [1, 32], strides = [1, 1]} : vector<8x128xf32> to vector<1x32xf32>
    %114 = vector.broadcast %113 : vector<1x32xf32> to vector<16x32xf32>
    %115 = arith.addf %112, %114 : vector<16x32xf32>
    %116 = arith.truncf %115 : vector<16x32xf32> to vector<16x32xbf16>
    %cst_44 = arith.constant dense<0.000000e+00> : vector<16x128xf32>
    %117 = tpu.matmul %116, %63, %cst_44 {dimension_numbers = #tpu.dot_dimension_numbers<[1], [0], [0], [1], [0, 0, 1, 1], [], []>} : vector<16x32xbf16>, vector<32x128xbf16>, vector<16x128xf32> -> vector<16x128xf32>
    %c2_i32 = arith.constant 2 : i32
    %118 = arith.cmpi eq, %arg0, %c2_i32 : i32
    %119 = arith.extui %118 : i1 to i32
    %c0_i32_45 = arith.constant 0 : i32
    %120 = arith.cmpi ne, %119, %c0_i32_45 : i32
    scf.if %120 {
      %121 = vector.broadcast %14 : vector<16x1xf32> to vector<16x128xf32>
      %122 = arith.mulf %117, %121 : vector<16x128xf32>
      %c4 = arith.constant 4 : index
      %c0_46 = arith.constant 0 : index
      %123 = vector.load %arg11[%c4, %c0_46] : memref<8x128xf32, #tpu.memory_space<vmem>>, vector<1x128xf32>
      %cst_47 = arith.constant dense<0.000000e+00> : vector<128xf32>
      %124 = vector.multi_reduction <add>, %122, %cst_47 [0] : vector<16x128xf32> to vector<128xf32>
      %125 = vector.shape_cast %124 : vector<128xf32> to vector<1x128xf32>
      %126 = arith.addf %123, %125 : vector<1x128xf32>
      %c4_48 = arith.constant 4 : index
      %c0_49 = arith.constant 0 : index
      %127 = vector.load %arg11[%c4_48, %c0_49] : memref<8x128xf32, #tpu.memory_space<vmem>>, vector<1x128xf32>
      tpu.vector_store %arg11[%c4_48, %c0_49], %126 {strides = array<i32>} : memref<8x128xf32, #tpu.memory_space<vmem>>, vector<1x128xf32>,
      %c5 = arith.constant 5 : index
      %c0_50 = arith.constant 0 : index
      %128 = vector.load %arg11[%c5, %c0_50] : memref<8x128xf32, #tpu.memory_space<vmem>>, vector<1x128xf32>
      %129 = arith.mulf %122, %122 : vector<16x128xf32>
      %cst_51 = arith.constant dense<0.000000e+00> : vector<128xf32>
      %130 = vector.multi_reduction <add>, %129, %cst_51 [0] : vector<16x128xf32> to vector<128xf32>
      %131 = vector.shape_cast %130 : vector<128xf32> to vector<1x128xf32>
      %132 = arith.addf %128, %131 : vector<1x128xf32>
      %c5_52 = arith.constant 5 : index
      %c0_53 = arith.constant 0 : index
      %133 = vector.load %arg11[%c5_52, %c0_53] : memref<8x128xf32, #tpu.memory_space<vmem>>, vector<1x128xf32>
      tpu.vector_store %arg11[%c5_52, %c0_53], %132 {strides = array<i32>} : memref<8x128xf32, #tpu.memory_space<vmem>>, vector<1x128xf32>,
    } else {
    }
    return
  }
  func.func @transform_0(%arg0: i32, %arg1: i32) -> (i32, i32) {
    %c0_i32 = arith.constant 0 : i32
    %c0_i32_0 = arith.constant 0 : i32
    return %arg1, %c0_i32 : i32, i32
  }
  func.func @transform_1(%arg0: i32, %arg1: i32) -> (i32, i32) {
    %c0_i32 = arith.constant 0 : i32
    %c0_i32_0 = arith.constant 0 : i32
    return %arg1, %c0_i32 : i32, i32
  }
  func.func @transform_2(%arg0: i32, %arg1: i32) -> (i32, i32) {
    %c0_i32 = arith.constant 0 : i32
    %c0_i32_0 = arith.constant 0 : i32
    return %arg1, %c0_i32 : i32, i32
  }
  func.func @transform_3(%arg0: i32, %arg1: i32) -> (i32, i32) {
    %c0_i32 = arith.constant 0 : i32
    %c0_i32_0 = arith.constant 0 : i32
    %c0_i32_1 = arith.constant 0 : i32
    return %c0_i32, %c0_i32_0 : i32, i32
  }
  func.func @transform_4(%arg0: i32, %arg1: i32) -> (i32, i32) {
    %c0_i32 = arith.constant 0 : i32
    %c0_i32_0 = arith.constant 0 : i32
    %c0_i32_1 = arith.constant 0 : i32
    return %c0_i32, %c0_i32_0 : i32, i32
  }
  func.func @transform_5(%arg0: i32, %arg1: i32) -> (i32, i32) {
    %c0_i32 = arith.constant 0 : i32
    %c0_i32_0 = arith.constant 0 : i32
    %c0_i32_1 = arith.constant 0 : i32
    return %c0_i32, %c0_i32_0 : i32, i32
  }
  func.func @transform_6(%arg0: i32, %arg1: i32) -> (i32, i32) {
    %c0_i32 = arith.constant 0 : i32
    %c0_i32_0 = arith.constant 0 : i32
    %c0_i32_1 = arith.constant 0 : i32
    return %c0_i32, %c0_i32_0 : i32, i32
  }
  func.func @transform_7(%arg0: i32, %arg1: i32) -> (i32, i32) {
    %c0_i32 = arith.constant 0 : i32
    %c0_i32_0 = arith.constant 0 : i32
    %c0_i32_1 = arith.constant 0 : i32
    return %c0_i32, %c0_i32_0 : i32, i32
  }
  func.func @transform_8(%arg0: i32, %arg1: i32) -> (i32, i32) {
    %c0_i32 = arith.constant 0 : i32
    %c0_i32_0 = arith.constant 0 : i32
    %c0_i32_1 = arith.constant 0 : i32
    return %c0_i32, %c0_i32_0 : i32, i32
  }
  func.func @transform_9(%arg0: i32, %arg1: i32) -> (i32, i32) {
    %c0_i32 = arith.constant 0 : i32
    %c0_i32_0 = arith.constant 0 : i32
    %c0_i32_1 = arith.constant 0 : i32
    return %c0_i32, %c0_i32_0 : i32, i32
  }
}

</mosaic_0001>

<llo_original>
// kernel: proxy_encoder_forward.2
$region0: #{proxy_encoder_forward.2}
  #allocation0 [shape = 'u32[]', space=smem, size = 0x4, offset = 0x4, fixed_abs, tag = 'smem constant byte address 0x4 - core index']
  #allocation1 [shape = 'u32[144,128]{1,0:T(1,128)}', space=vmem, size = 0x12000, scoped, tag = 'internal scratch']
  %s0 = inlined_call_operand.vmem [shape: bf16[16,75], index: 0, kind: input, shape index: {}]
  %s1 = inlined_call_operand.vmem [shape: bf16[16,75], index: 1, kind: input, shape index: {}]
  %s2 = inlined_call_operand.vmem [shape: bf16[16,5], index: 2, kind: input, shape index: {}]
  %s3 = inlined_call_operand.vmem [shape: bf16[75,128], index: 3, kind: input, shape index: {}]
  %s4 = inlined_call_operand.vmem [shape: bf16[75,128], index: 4, kind: input, shape index: {}]
  %s5 = inlined_call_operand.vmem [shape: bf16[5,128], index: 5, kind: input, shape index: {}]
  %s6 = inlined_call_operand.vmem [shape: bf16[128,32], index: 6, kind: input, shape index: {}]
  %s7 = inlined_call_operand.vmem [shape: bf16[32,128], index: 7, kind: input, shape index: {}]
  %s8 = inlined_call_operand.vmem [shape: f32[8,128], index: 8, kind: input, shape index: {}]
  %s9 = inlined_call_operand.vmem [shape: f32[8,128], index: 9, kind: output, shape index: {}]
  %s10 = sld [smem:[#allocation0]]
  $region85: #{proxy_encoder_forward.2} parent=0
    _
  %s12 = ssub.s32 1, %s10
  %s13 = scalar_select 0, %s12, %s10
  loop: start=0, step=1, limit=5
  $region2: #{proxy_encoder_forward.2} parent=0 // loop_pre_header
    _
  $region3: #{proxy_encoder_forward.2} parent=0 // loop_header
    %s15 = sphi 0, %s19
    %p16 = scmp.ge.s32.totalorder %s15, 5
    %s22 = sphi 0, %s34
    %s23 = sphi 0, %s30
    %s24 = sphi 0, %s22
    %s25 = sphi 0, %s23
    %s26 = sphi 0, %s24
    %s27 = sphi 0, %s25
    %s37 = sphi 0, %s39
    %s40 = sphi 0, %s37
    %s41 = sphi 0, %s40
    %s57 = sphi 0, %s41
    %s63 = sphi 0, %s65
    %s66 = sphi 0, %s63
    %s67 = sphi 0, %s66
    %s83 = sphi 0, %s67
    %s89 = sphi 0, %s91
    %s92 = sphi 0, %s89
    %s93 = sphi 0, %s92
    %s109 = sphi 0, %s93
    %s113 = sphi 0, %s113
    %s115 = sphi 0, %s113
    %s116 = sphi 0, %s115
    %s130 = sphi 0, %s116
    %s134 = sphi 0, %s134
    %s136 = sphi 0, %s134
    %s137 = sphi 0, %s136
    %s151 = sphi 0, %s137
    %s155 = sphi 0, %s155
    %s157 = sphi 0, %s155
    %s158 = sphi 0, %s157
    %s172 = sphi 0, %s158
    %s176 = sphi 0, %s176
    %s178 = sphi 0, %s176
    %s179 = sphi 0, %s178
    %s193 = sphi 0, %s179
    %s197 = sphi 0, %s197
    %s199 = sphi 0, %s197
    %s200 = sphi 0, %s199
    %s214 = sphi 0, %s200
    %s218 = sphi 0, %s218
    %s220 = sphi 0, %s218
    %s221 = sphi 0, %s220
    %s235 = sphi 0, %s221
    %s239 = sphi 0, %s239
    %s241 = sphi 0, %s239
    %s242 = sphi 0, %s241
    %s256 = sphi 0, %s242
  $region4: #{proxy_encoder_forward.2} parent=0 // loop_header_branch
    %18 = sbr.rel (%p16) target = $region8
  $region5: #{proxy_encoder_forward.2} parent=0 // loop_body
    %s20 = ssub.s32 %s15, 1
    %s21 = ssub.s32 %s15, 2
    %s28 = sadd.s32 1, %s23
    %p29 = scmp.ge.s32.totalorder %s28, 1
    %s30 = scalar_select %p29, 0, %s28
    %s31 = sadd.s32 1, %s22
    %s32 = scalar_select %p29, %s31, %s22
    %p33 = scmp.ge.s32.totalorder %s32, 3
    %s34 = scalar_select %p33, 0, %s32
    %s35 = ssub.s32 %s23, %s30
    %p36 = scmp.eq.s32.totalorder %s35, 0
    %s38 = sadd.s32 %s37, 1
    %s39 = scalar_select %p36, %s37, %s38
    %p42 = pneg %p36
    %p43 = scmp.eq.s32.totalorder %s15, 2
    %p44 = por %p42, %p43
    %p45 = scmp.ne.s32.totalorder %s37, %s40
    %p46 = scmp.eq.s32.totalorder %s15, 0
    %p47 = por %p45, %p46
    %p48 = scmp.ne.s32.totalorder %s37, %s40
    %p49 = scmp.eq.s32.totalorder %s20, 2
    %p50 = por %p48, %p49
    %p51 = scmp.ne.s32.totalorder %s40, %s41
    %p52 = scmp.eq.s32.totalorder %s20, 0
    %p53 = por %p51, %p52
    %p54 = scmp.ne.s32.totalorder %s40, %s41
    %p55 = scmp.eq.s32.totalorder %s21, 2
    %p56 = por %p54, %p55
    %p58 = scmp.ne.s32.totalorder %s41, %s57
    %p59 = scmp.eq.s32.totalorder %s21, 0
    %p60 = por %p58, %p59
    %s61 = ssub.s32 %s23, %s30
    %p62 = scmp.eq.s32.totalorder %s61, 0
    %s64 = sadd.s32 %s63, 1
    %s65 = scalar_select %p62, %s63, %s64
    %p68 = pneg %p62
    %p69 = scmp.eq.s32.totalorder %s15, 2
    %p70 = por %p68, %p69
    %p71 = scmp.ne.s32.totalorder %s63, %s66
    %p72 = scmp.eq.s32.totalorder %s15, 0
    %p73 = por %p71, %p72
    %p74 = scmp.ne.s32.totalorder %s63, %s66
    %p75 = scmp.eq.s32.totalorder %s20, 2
    %p76 = por %p74, %p75
    %p77 = scmp.ne.s32.totalorder %s66, %s67
    %p78 = scmp.eq.s32.totalorder %s20, 0
    %p79 = por %p77, %p78
    %p80 = scmp.ne.s32.totalorder %s66, %s67
    %p81 = scmp.eq.s32.totalorder %s21, 2
    %p82 = por %p80, %p81
    %p84 = scmp.ne.s32.totalorder %s67, %s83
    %p85 = scmp.eq.s32.totalorder %s21, 0
    %p86 = por %p84, %p85
    %s87 = ssub.s32 %s23, %s30
    %p88 = scmp.eq.s32.totalorder %s87, 0
    %s90 = sadd.s32 %s89, 1
    %s91 = scalar_select %p88, %s89, %s90
    %p94 = pneg %p88
    %p95 = scmp.eq.s32.totalorder %s15, 2
    %p96 = por %p94, %p95
    %p97 = scmp.ne.s32.totalorder %s89, %s92
    %p98 = scmp.eq.s32.totalorder %s15, 0
    %p99 = por %p97, %p98
    %p100 = scmp.ne.s32.totalorder %s89, %s92
    %p101 = scmp.eq.s32.totalorder %s20, 2
    %p102 = por %p100, %p101
    %p103 = scmp.ne.s32.totalorder %s92, %s93
    %p104 = scmp.eq.s32.totalorder %s20, 0
    %p105 = por %p103, %p104
    %p106 = scmp.ne.s32.totalorder %s92, %s93
    %p107 = scmp.eq.s32.totalorder %s21, 2
    %p108 = por %p106, %p107
    %p110 = scmp.ne.s32.totalorder %s93, %s109
    %p111 = scmp.eq.s32.totalorder %s21, 0
    %p112 = por %p110, %p111
    %s114 = sadd.s32 %s113, 1
    %p117 = scmp.eq.s32.totalorder %s15, 2
    %p118 = scmp.ne.s32.totalorder %s113, %s115
    %p119 = scmp.eq.s32.totalorder %s15, 0
    %p120 = por %p118, %p119
    %p121 = scmp.ne.s32.totalorder %s113, %s115
    %p122 = scmp.eq.s32.totalorder %s20, 2
    %p123 = por %p121, %p122
    %p124 = scmp.ne.s32.totalorder %s115, %s116
    %p125 = scmp.eq.s32.totalorder %s20, 0
    %p126 = por %p124, %p125
    %p127 = scmp.ne.s32.totalorder %s115, %s116
    %p128 = scmp.eq.s32.totalorder %s21, 2
    %p129 = por %p127, %p128
    %p131 = scmp.ne.s32.totalorder %s116, %s130
    %p132 = scmp.eq.s32.totalorder %s21, 0
    %p133 = por %p131, %p132
    %s135 = sadd.s32 %s134, 1
    %p138 = scmp.eq.s32.totalorder %s15, 2
    %p139 = scmp.ne.s32.totalorder %s134, %s136
    %p140 = scmp.eq.s32.totalorder %s15, 0
    %p141 = por %p139, %p140
    %p142 = scmp.ne.s32.totalorder %s134, %s136
    %p143 = scmp.eq.s32.totalorder %s20, 2
    %p144 = por %p142, %p143
    %p145 = scmp.ne.s32.totalorder %s136, %s137
    %p146 = scmp.eq.s32.totalorder %s20, 0
    %p147 = por %p145, %p146
    %p148 = scmp.ne.s32.totalorder %s136, %s137
    %p149 = scmp.eq.s32.totalorder %s21, 2
    %p150 = por %p148, %p149
    %p152 = scmp.ne.s32.totalorder %s137, %s151
    %p153 = scmp.eq.s32.totalorder %s21, 0
    %p154 = por %p152, %p153
    %s156 = sadd.s32 %s155, 1
    %p159 = scmp.eq.s32.totalorder %s15, 2
    %p160 = scmp.ne.s32.totalorder %s155, %s157
    %p161 = scmp.eq.s32.totalorder %s15, 0
    %p162 = por %p160, %p161
    %p163 = scmp.ne.s32.totalorder %s155, %s157
    %p164 = scmp.eq.s32.totalorder %s20, 2
    %p165 = por %p163, %p164
    %p166 = scmp.ne.s32.totalorder %s157, %s158
    %p167 = scmp.eq.s32.totalorder %s20, 0
    %p168 = por %p166, %p167
    %p169 = scmp.ne.s32.totalorder %s157, %s158
    %p170 = scmp.eq.s32.totalorder %s21, 2
    %p171 = por %p169, %p170
    %p173 = scmp.ne.s32.totalorder %s158, %s172
    %p174 = scmp.eq.s32.totalorder %s21, 0
    %p175 = por %p173, %p174
    %s177 = sadd.s32 %s176, 1
    %p180 = scmp.eq.s32.totalorder %s15, 2
    %p181 = scmp.ne.s32.totalorder %s176, %s178
    %p182 = scmp.eq.s32.totalorder %s15, 0
    %p183 = por %p181, %p182
    %p184 = scmp.ne.s32.totalorder %s176, %s178
    %p185 = scmp.eq.s32.totalorder %s20, 2
    %p186 = por %p184, %p185
    %p187 = scmp.ne.s32.totalorder %s178, %s179
    %p188 = scmp.eq.s32.totalorder %s20, 0
    %p189 = por %p187, %p188
    %p190 = scmp.ne.s32.totalorder %s178, %s179
    %p191 = scmp.eq.s32.totalorder %s21, 2
    %p192 = por %p190, %p191
    %p194 = scmp.ne.s32.totalorder %s179, %s193
    %p195 = scmp.eq.s32.totalorder %s21, 0
    %p196 = por %p194, %p195
    %s198 = sadd.s32 %s197, 1
    %p201 = scmp.eq.s32.totalorder %s15, 2
    %p202 = scmp.ne.s32.totalorder %s197, %s199
    %p203 = scmp.eq.s32.totalorder %s15, 0
    %p204 = por %p202, %p203
    %p205 = scmp.ne.s32.totalorder %s197, %s199
    %p206 = scmp.eq.s32.totalorder %s20, 2
    %p207 = por %p205, %p206
    %p208 = scmp.ne.s32.totalorder %s199, %s200
    %p209 = scmp.eq.s32.totalorder %s20, 0
    %p210 = por %p208, %p209
    %p211 = scmp.ne.s32.totalorder %s199, %s200
    %p212 = scmp.eq.s32.totalorder %s21, 2
    %p213 = por %p211, %p212
    %p215 = scmp.ne.s32.totalorder %s200, %s214
    %p216 = scmp.eq.s32.totalorder %s21, 0
    %p217 = por %p215, %p216
    %s219 = sadd.s32 %s218, 1
    %p222 = scmp.eq.s32.totalorder %s15, 2
    %p223 = scmp.ne.s32.totalorder %s218, %s220
    %p224 = scmp.eq.s32.totalorder %s15, 0
    %p225 = por %p223, %p224
    %p226 = scmp.ne.s32.totalorder %s218, %s220
    %p227 = scmp.eq.s32.totalorder %s20, 2
    %p228 = por %p226, %p227
    %p229 = scmp.ne.s32.totalorder %s220, %s221
    %p230 = scmp.eq.s32.totalorder %s20, 0
    %p231 = por %p229, %p230
    %p232 = scmp.ne.s32.totalorder %s220, %s221
    %p233 = scmp.eq.s32.totalorder %s21, 2
    %p234 = por %p232, %p233
    %p236 = scmp.ne.s32.totalorder %s221, %s235
    %p237 = scmp.eq.s32.totalorder %s21, 0
    %p238 = por %p236, %p237
    %s240 = sadd.s32 %s239, 1
    %p243 = scmp.eq.s32.totalorder %s15, 2
    %p244 = scmp.ne.s32.totalorder %s239, %s241
    %p245 = scmp.eq.s32.totalorder %s15, 0
    %p246 = por %p244, %p245
    %p247 = scmp.ne.s32.totalorder %s239, %s241
    %p248 = scmp.eq.s32.totalorder %s20, 2
    %p249 = por %p247, %p248
    %p250 = scmp.ne.s32.totalorder %s241, %s242
    %p251 = scmp.eq.s32.totalorder %s20, 0
    %p252 = por %p250, %p251
    %p253 = scmp.ne.s32.totalorder %s241, %s242
    %p254 = scmp.eq.s32.totalorder %s21, 2
    %p255 = por %p253, %p254
    %p257 = scmp.ne.s32.totalorder %s242, %s256
    %p258 = scmp.eq.s32.totalorder %s21, 0
    %p259 = por %p257, %p258
    %p260 = scmp.le.s32.totalorder 1, %s15
    %p261 = scmp.lt.s32.totalorder %s15, 4
    %p262 = pnand %p260, %p261
    %p263 = pneg %p262
    // Predicated region
    $region9: #{proxy_encoder_forward.2} parent=5 // pred_check
      _
    $region10: #{proxy_encoder_forward.2} parent=5 // pred_check_branch
      %265 = sbr.rel (%p262) target = $region12
    $region11: #{proxy_encoder_forward.2} parent=5 // pred_region
      %s266 = ssub.s32 %s15, 1
      // Predicated region
      $region13: #{proxy_encoder_forward.2} parent=11 // pred_check
        %p267 = pneg %p53
      $region14: #{proxy_encoder_forward.2} parent=11 // pred_check_branch
        %269 = sbr.rel (%p267) target = $region16
      $region15: #{proxy_encoder_forward.2} parent=11 // pred_region
        %s270 = smul.u32 2, %s25
        %p271 = scmp.lt.s32.totalorder %s270, 1
        %s272 = scalar_select %p271, %s270, 1
        %s273 = smul.addr %s272, 4
        %s274 = scalar_lea.vmem %s0, %s273
        %s275 = smul.u32 2, %s25
      $region16: #{proxy_encoder_forward.2} parent=11 // pred_fallthru
        _
      // Predicated region
      $region17: #{proxy_encoder_forward.2} parent=11 // pred_check
        %p276 = pneg %p79
      $region18: #{proxy_encoder_forward.2} parent=11 // pred_check_branch
        %278 = sbr.rel (%p276) target = $region20
      $region19: #{proxy_encoder_forward.2} parent=11 // pred_region
        %s279 = smul.u32 2, %s25
        %p280 = scmp.lt.s32.totalorder %s279, 1
        %s281 = scalar_select %p280, %s279, 1
        %s282 = smul.addr %s281, 4
        %s283 = scalar_lea.vmem %s1, %s282
        %s284 = smul.u32 2, %s25
      $region20: #{proxy_encoder_forward.2} parent=11 // pred_fallthru
        _
      // Predicated region
      $region21: #{proxy_encoder_forward.2} parent=11 // pred_check
        %p285 = pneg %p105
      $region22: #{proxy_encoder_forward.2} parent=11 // pred_check_branch
        %287 = sbr.rel (%p285) target = $region24
      $region23: #{proxy_encoder_forward.2} parent=11 // pred_region
        %s288 = smul.u32 2, %s25
        %p289 = scmp.lt.s32.totalorder %s288, 1
        %s290 = scalar_select %p289, %s288, 1
        %s291 = smul.addr %s290, 4
        %s292 = scalar_lea.vmem %s2, %s291
        %s293 = smul.u32 2, %s25
      $region24: #{proxy_encoder_forward.2} parent=11 // pred_fallthru
        _
      // Predicated region
      $region25: #{proxy_encoder_forward.2} parent=11 // pred_check
        %p294 = pneg %p126
      $region26: #{proxy_encoder_forward.2} parent=11 // pred_check_branch
        %296 = sbr.rel (%p294) target = $region28
      $region27: #{proxy_encoder_forward.2} parent=11 // pred_region
        _
      $region28: #{proxy_encoder_forward.2} parent=11 // pred_fallthru
        _
      // Predicated region
      $region29: #{proxy_encoder_forward.2} parent=11 // pred_check
        %p297 = pneg %p147
      $region30: #{proxy_encoder_forward.2} parent=11 // pred_check_branch
        %299 = sbr.rel (%p297) target = $region32
      $region31: #{proxy_encoder_forward.2} parent=11 // pred_region
        _
      $region32: #{proxy_encoder_forward.2} parent=11 // pred_fallthru
        _
      // Predicated region
      $region33: #{proxy_encoder_forward.2} parent=11 // pred_check
        %p300 = pneg %p168
      $region34: #{proxy_encoder_forward.2} parent=11 // pred_check_branch
        %302 = sbr.rel (%p300) target = $region36
      $region35: #{proxy_encoder_forward.2} parent=11 // pred_region
        _
      $region36: #{proxy_encoder_forward.2} parent=11 // pred_fallthru
        _
      // Predicated region
      $region37: #{proxy_encoder_forward.2} parent=11 // pred_check
        %p303 = pneg %p189
      $region38: #{proxy_encoder_forward.2} parent=11 // pred_check_branch
        %305 = sbr.rel (%p303) target = $region40
      $region39: #{proxy_encoder_forward.2} parent=11 // pred_region
        _
      $region40: #{proxy_encoder_forward.2} parent=11 // pred_fallthru
        _
      // Predicated region
      $region41: #{proxy_encoder_forward.2} parent=11 // pred_check
        %p306 = pneg %p210
      $region42: #{proxy_encoder_forward.2} parent=11 // pred_check_branch
        %308 = sbr.rel (%p306) target = $region44
      $region43: #{proxy_encoder_forward.2} parent=11 // pred_region
        _
      $region44: #{proxy_encoder_forward.2} parent=11 // pred_fallthru
        _
      // Predicated region
      $region45: #{proxy_encoder_forward.2} parent=11 // pred_check
        %p309 = pneg %p231
      $region46: #{proxy_encoder_forward.2} parent=11 // pred_check_branch
        %311 = sbr.rel (%p309) target = $region48
      $region47: #{proxy_encoder_forward.2} parent=11 // pred_region
        _
      $region48: #{proxy_encoder_forward.2} parent=11 // pred_fallthru
        _
    $region12: #{proxy_encoder_forward.2} parent=5 // pred_fallthru
      _
    %p312 = scmp.lt.s32.totalorder %s15, 3
    // Predicated region
    $region49: #{proxy_encoder_forward.2} parent=5 // pred_check
      %p313 = pneg %p312
    $region50: #{proxy_encoder_forward.2} parent=5 // pred_check_branch
      %315 = sbr.rel (%p313) target = $region52
    $region51: #{proxy_encoder_forward.2} parent=5 // pred_region
      _
    $region52: #{proxy_encoder_forward.2} parent=5 // pred_fallthru
      _
    %p316 = scmp.le.s32.totalorder 1, %s15
    %p317 = scmp.lt.s32.totalorder %s15, 4
    %p318 = pnand %p316, %p317
    %p319 = pneg %p318
    // Predicated region
    $region53: #{proxy_encoder_forward.2} parent=5 // pred_check
      _
    $region54: #{proxy_encoder_forward.2} parent=5 // pred_check_branch
      %321 = sbr.rel (%p318) target = $region56
    $region55: #{proxy_encoder_forward.2} parent=5 // pred_region
      %s322 = ssub.s32 %s15, 1
      %s323 = smul.u32 2, %s25
      %p324 = scmp.lt.s32.totalorder %s323, 1
      %s325 = scalar_select %p324, %s323, 1
      %s326 = smul.addr %s325, 4
      %s327 = scalar_lea.vmem %s0, %s326
      %p328 = pneg %p53
      %p329 = pneg %p50
      %s330 = smul.u32 2, %s25
      %p331 = scmp.lt.s32.totalorder %s330, 1
      %s332 = scalar_select %p331, %s330, 1
      %s333 = smul.addr %s332, 4
      %s334 = scalar_lea.vmem %s1, %s333
      %p335 = pneg %p79
      %p336 = pneg %p76
      %s337 = smul.u32 2, %s25
      %p338 = scmp.lt.s32.totalorder %s337, 1
      %s339 = scalar_select %p338, %s337, 1
      %s340 = smul.addr %s339, 4
      %s341 = scalar_lea.vmem %s2, %s340
      %p342 = pneg %p105
      %p343 = pneg %p102
      %p344 = pneg %p126
      %p345 = pneg %p123
      %p346 = pneg %p147
      %p347 = pneg %p144
      %p348 = pneg %p168
      %p349 = pneg %p165
      %p350 = pneg %p189
      %p351 = pneg %p186
      %p352 = pneg %p210
      %p353 = pneg %p207
      %p354 = pneg %p231
      %p355 = pneg %p228
      %p356 = pneg %p252
      %p357 = pneg %p249
      %s358 = smul.u32 2, %s25
      %p359 = scmp.lt.s32.totalorder %s358, 1
      %s360 = scalar_select %p359, %s358, 1
      %s361 = smul.addr %s360, 4
      %s362 = scalar_lea.vmem %s0, %s361
      %s363 = smul.u32 2, %s25
      %s364 = smul.u32 2, %s25
      %p365 = scmp.lt.s32.totalorder %s364, 1
      %s366 = scalar_select %p365, %s364, 1
      %s367 = smul.addr %s366, 4
      %s368 = scalar_lea.vmem %s1, %s367
      %s369 = smul.u32 2, %s25
      %s370 = smul.u32 2, %s25
      %p371 = scmp.lt.s32.totalorder %s370, 1
      %s372 = scalar_select %p371, %s370, 1
      %s373 = smul.addr %s372, 4
      %s374 = scalar_lea.vmem %s2, %s373
      %s375 = smul.u32 2, %s25
      %p377 = scmp.eq.s32.totalorder %s24, 0
      %p378 = scmp.eq.s32.totalorder %s25, 0
      %p379 = pnand %p377, %p378
      %p380 = pneg %p379
      // Predicated region
      $region57: #{proxy_encoder_forward.2} parent=55 // pred_check
        _
      $region58: #{proxy_encoder_forward.2} parent=55 // pred_check_branch
        %382 = sbr.rel (%p379) target = $region60
      $region59: #{proxy_encoder_forward.2} parent=55 // pred_region
        %383 = vst [vmem:[%s9] sm:$0xff] 0.0
      $region60: #{proxy_encoder_forward.2} parent=55 // pred_fallthru
        _
      %v384 = vld [vmem:[%s8] sm:$0xff]
      %v385 = vld [vmem:[%s9] sm:$0xff]
      %v386 = vlaneseq
      %v387 = vshrl.u32 %v386, 7
      %v388 = vadd.s32 %v387, 8
      %s389 = smul.u32 %s25, 16
      %v390 = vstv %s389
      %v391 = vadd.s32 %v387, %v390
      %v392 = vadd.s32 %v388, %v390
      %vm393 = vcmp.lt.s32.totalorder %v391, 8
      %vm394 = vcmp.lt.s32.totalorder %v392, 8
      %v395 = vsel %vm393, 1, 0
      %v396 = vsel %vm394, 1, 0
      %v397 = vcvt.s32.f32 %v395
      %v398 = vcvt.s32.f32 %v396
      %v399 = vld [vmem:[%s362] sm:$0xf]
      %v400 = vld [vmem:[%s362 + $0x4] sm:$0xf]
      %v401 = vld [vmem:[%s368] sm:$0xf]
      %v402 = vld [vmem:[%s368 + $0x4] sm:$0xf]
      %v403 = vld [vmem:[%s374] sm:$0xf]
      %v404 = vld [vmem:[%s374 + $0x4] sm:$0xf]
      %v405 = vld [vmem:[%s3] sm:$0xf]
      %v406 = vld [vmem:[%s3 + $0x4] sm:$0xf]
      %v407 = vld [vmem:[%s3 + $0x8] sm:$0xf]
      %v408 = vld [vmem:[%s3 + $0xc] sm:$0xf]
      %v409 = vld [vmem:[%s3 + $0x10] sm:$0xf]
      %v410 = vld [vmem:[%s3 + $0x14] sm:$0xf]
      %v411 = vld [vmem:[%s3 + $0x18] sm:$0xf]
      %v412 = vld [vmem:[%s3 + $0x1c] sm:$0xf]
      %v413 = vld [vmem:[%s3 + $0x20] sm:$0xf]
      %v414 = vld [vmem:[%s3 + $0x24] sm:$0x3]
      %v415 = vld [vmem:[%s4] sm:$0xf]
      %v416 = vld [vmem:[%s4 + $0x4] sm:$0xf]
      %v417 = vld [vmem:[%s4 + $0x8] sm:$0xf]
      %v418 = vld [vmem:[%s4 + $0xc] sm:$0xf]
      %v419 = vld [vmem:[%s4 + $0x10] sm:$0xf]
      %v420 = vld [vmem:[%s4 + $0x14] sm:$0xf]
      %v421 = vld [vmem:[%s4 + $0x18] sm:$0xf]
      %v422 = vld [vmem:[%s4 + $0x1c] sm:$0xf]
      %v423 = vld [vmem:[%s4 + $0x20] sm:$0xf]
      %v424 = vld [vmem:[%s4 + $0x24] sm:$0x3]
      %v425 = vld [vmem:[%s5] sm:$0x7]
      %v428 = vunpack.c.l.b16 %v401
      %v429 = vunpack.c.l.b16 %v402
      %v430 = vpack.c.b16 %v429, %v428
      %v441 = vunpack.c.l.b16 %v415
      %v442 = vunpack.c.l.b16 %v416
      %v443 = vunpack.c.l.b16 %v417
      %v444 = vunpack.c.l.b16 %v418
      %v445 = vunpack.c.l.b16 %v419
      %v446 = vunpack.c.l.b16 %v420
      %v447 = vunpack.c.l.b16 %v421
      %v448 = vunpack.c.l.b16 %v422
      %v449 = vunpack.c.l.b16 %v423
      %v450 = vunpack.c.l.b16 %v424
      %v451 = vpack.c.b16 %v442, %v441
      %v452 = vpack.c.b16 %v444, %v443
      %v453 = vpack.c.b16 %v446, %v445
      %v454 = vpack.c.b16 %v448, %v447
      %v455 = vpack.c.b16 %v450, %v449
      %vm460 = vcmask 613376
      %v462 = vsel %vm460, %v430, 0
      %vm464 = vcmask 1044480
      %vm465 = vcmask 1045504
      %v466 = vsel %vm464, 4294967295, 65535
      %v467 = vsel %vm465, %v466, 0
      %v469 = vand.u32 %v455, %v467
      %471 = vmatprep.subr.bf16.mxu0 0
      %472 = vmatpush1.bf16.msra.mxu0 %v451
      %473 = vmatprep.subr.bf16.mxu0 0
      %474 = vmatpush1.bf16.msra.mxu0 %v452
      %475 = vmatprep.subr.bf16.mxu0 0
      %476 = vmatpush1.bf16.msra.mxu0 %v453
      %477 = vmatprep.subr.bf16.mxu0 0
      %478 = vmatpush1.bf16.msra.mxu0 %v454
      %479 = vmatprep.subr.bf16.mxu0 0
      %480 = vmatpush1.bf16.msra.mxu0 %v469
      %481 = vmatprep.subr.bf16.mxu0 0
      %482 = vmatpush1.bf16.msra.mxu0 0
      %483 = vmatprep.subr.bf16.mxu0 0
      %484 = vmatpush1.bf16.msra.mxu0 0
      %485 = vmatprep.subr.bf16.mxu0 0
      %486 = vmatpush1.bf16.msra.mxu0 0
      %487 = vmatprep.subr.bf16.mxu0 0
      %488 = vmatpush1.bf16.msra.mxu0 0
      %489 = vmatprep.subr.bf16.mxu0 0
      %490 = vmatpush1.bf16.msra.mxu0 0
      %491 = vmatprep.subr.bf16.mxu0 0
      %492 = vmatpush1.bf16.msra.mxu0 0
      %493 = vmatprep.subr.bf16.mxu0 0
      %494 = vmatpush1.bf16.msra.mxu0 0
      %495 = vmatprep.subr.bf16.mxu0 0
      %496 = vmatpush1.bf16.msra.mxu0 0
      %497 = vmatprep.subr.bf16.mxu0 0
      %498 = vmatpush1.bf16.msra.mxu0 0
      %499 = vmatprep.subr.bf16.mxu0 0
      %500 = vmatpush1.bf16.msra.mxu0 0
      %501 = vmatprep.subr.bf16.mxu0 0
      %502 = vmatpush1.bf16.msra.mxu0 0
      %503 = vmatprep.mubr.bf16.mxu0 0
      %504 = vmatmul.mubr.bf16.gmra.mrb[0].mxu0 %v462
      %v505 = vpop.f32.mrb[0].mxu0
      %v506 = vadd.f32 0.0, %v505
      %v507 = vpop.f32.mrb[0].mxu0
      %v508 = vpop.f32.mrb[0].mxu0
      %v509 = vadd.f32 0.0, %v508
      %v510 = vpop.f32.mrb[0].mxu0
      %511 = vdwg.mxu0
      %v514 = vunpack.c.l.b16 %v399
      %v515 = vunpack.c.l.b16 %v400
      %v516 = vpack.c.b16 %v515, %v514
      %v527 = vunpack.c.l.b16 %v405
      %v528 = vunpack.c.l.b16 %v406
      %v529 = vunpack.c.l.b16 %v407
      %v530 = vunpack.c.l.b16 %v408
      %v531 = vunpack.c.l.b16 %v409
      %v532 = vunpack.c.l.b16 %v410
      %v533 = vunpack.c.l.b16 %v411
      %v534 = vunpack.c.l.b16 %v412
      %v535 = vunpack.c.l.b16 %v413
      %v536 = vunpack.c.l.b16 %v414
      %v537 = vpack.c.b16 %v528, %v527
      %v538 = vpack.c.b16 %v530, %v529
      %v539 = vpack.c.b16 %v532, %v531
      %v540 = vpack.c.b16 %v534, %v533
      %v541 = vpack.c.b16 %v536, %v535
      %v547 = vsel %vm460, %v516, 0
      %v550 = vand.u32 %v541, %v467
      %552 = vmatprep.subr.bf16.mxu0 0
      %553 = vmatpush1.bf16.msra.mxu0 %v537
      %554 = vmatprep.subr.bf16.mxu0 0
      %555 = vmatpush1.bf16.msra.mxu0 %v538
      %556 = vmatprep.subr.bf16.mxu0 0
      %557 = vmatpush1.bf16.msra.mxu0 %v539
      %558 = vmatprep.subr.bf16.mxu0 0
      %559 = vmatpush1.bf16.msra.mxu0 %v540
      %560 = vmatprep.subr.bf16.mxu0 0
      %561 = vmatpush1.bf16.msra.mxu0 %v550
      %562 = vmatprep.subr.bf16.mxu0 0
      %563 = vmatpush1.bf16.msra.mxu0 0
      %564 = vmatprep.subr.bf16.mxu0 0
      %565 = vmatpush1.bf16.msra.mxu0 0
      %566 = vmatprep.subr.bf16.mxu0 0
      %567 = vmatpush1.bf16.msra.mxu0 0
      %568 = vmatprep.subr.bf16.mxu0 0
      %569 = vmatpush1.bf16.msra.mxu0 0
      %570 = vmatprep.subr.bf16.mxu0 0
      %571 = vmatpush1.bf16.msra.mxu0 0
      %572 = vmatprep.subr.bf16.mxu0 0
      %573 = vmatpush1.bf16.msra.mxu0 0
      %574 = vmatprep.subr.bf16.mxu0 0
      %575 = vmatpush1.bf16.msra.mxu0 0
      %576 = vmatprep.subr.bf16.mxu0 0
      %577 = vmatpush1.bf16.msra.mxu0 0
      %578 = vmatprep.subr.bf16.mxu0 0
      %579 = vmatpush1.bf16.msra.mxu0 0
      %580 = vmatprep.subr.bf16.mxu0 0
      %581 = vmatpush1.bf16.msra.mxu0 0
      %582 = vmatprep.subr.bf16.mxu0 0
      %583 = vmatpush1.bf16.msra.mxu0 0
      %584 = vmatprep.mubr.bf16.mxu0 0
      %585 = vmatmul.mubr.bf16.gmra.mrb[0].mxu0 %v547
      %v586 = vpop.f32.mrb[0].mxu0
      %v587 = vadd.f32 %v506, %v586
      %v588 = vpop.f32.mrb[0].mxu0
      %v589 = vpop.f32.mrb[0].mxu0
      %v590 = vadd.f32 %v509, %v589
      %v591 = vpop.f32.mrb[0].mxu0
      %592 = vdwg.mxu0
      %v595 = vunpack.c.l.b16 %v403
      %v596 = vunpack.c.l.b16 %v404
      %v597 = vpack.c.b16 %v596, %v595
      %vm598 = vcmask 39936
      %v600 = vsel %vm598, %v597, 0
      %vm602 = vcmask 1041408
      %vm603 = vcmask 1042432
      %v604 = vsel %vm602, 4294967295, 65535
      %v605 = vsel %vm603, %v604, 0
      %v607 = vand.u32 %v425, %v605
      %609 = vmatprep.subr.bf16.mxu0 0
      %610 = vmatpush1.bf16.msra.mxu0 %v607
      %611 = vmatprep.subr.bf16.mxu0 0
      %612 = vmatpush1.bf16.msra.mxu0 0
      %613 = vmatprep.subr.bf16.mxu0 0
      %614 = vmatpush1.bf16.msra.mxu0 0
      %615 = vmatprep.subr.bf16.mxu0 0
      %616 = vmatpush1.bf16.msra.mxu0 0
      %617 = vmatprep.subr.bf16.mxu0 0
      %618 = vmatpush1.bf16.msra.mxu0 0
      %619 = vmatprep.subr.bf16.mxu0 0
      %620 = vmatpush1.bf16.msra.mxu0 0
      %621 = vmatprep.subr.bf16.mxu0 0
      %622 = vmatpush1.bf16.msra.mxu0 0
      %623 = vmatprep.subr.bf16.mxu0 0
      %624 = vmatpush1.bf16.msra.mxu0 0
      %625 = vmatprep.subr.bf16.mxu0 0
      %626 = vmatpush1.bf16.msra.mxu0 0
      %627 = vmatprep.subr.bf16.mxu0 0
      %628 = vmatpush1.bf16.msra.mxu0 0
      %629 = vmatprep.subr.bf16.mxu0 0
      %630 = vmatpush1.bf16.msra.mxu0 0
      %631 = vmatprep.subr.bf16.mxu0 0
      %632 = vmatpush1.bf16.msra.mxu0 0
      %633 = vmatprep.subr.bf16.mxu0 0
      %634 = vmatpush1.bf16.msra.mxu0 0
      %635 = vmatprep.subr.bf16.mxu0 0
      %636 = vmatpush1.bf16.msra.mxu0 0
      %637 = vmatprep.subr.bf16.mxu0 0
      %638 = vmatpush1.bf16.msra.mxu0 0
      %639 = vmatprep.subr.bf16.mxu0 0
      %640 = vmatpush1.bf16.msra.mxu0 0
      %641 = vmatprep.mubr.bf16.mxu0 0
      %642 = vmatmul.mubr.bf16.gmra.mrb[0].mxu0 %v600
      %v643 = vpop.f32.mrb[0].mxu0
      %v644 = vadd.f32 0.0, %v643
      %v645 = vpop.f32.mrb[0].mxu0
      %v646 = vpop.f32.mrb[0].mxu0
      %v647 = vadd.f32 0.0, %v646
      %v648 = vpop.f32.mrb[0].mxu0
      %649 = vdwg.mxu0
      %v650 = vadd.f32 %v587, %v644
      %v651 = vadd.f32 %v590, %v647
      // Predicated region
      $region61: #{proxy_encoder_forward.2} parent=55 // pred_check
        %p652 = pneg %p377
      $region62: #{proxy_encoder_forward.2} parent=55 // pred_check_branch
        %654 = sbr.rel (%p652) target = $region64
      $region63: #{proxy_encoder_forward.2} parent=55 // pred_region
        %v655 = vmul.f32 %v650, %v397
        %v656 = vmul.f32 %v651, %v398
        %v657 = vld [vmem:[%s9] sm:$0x1]
        %v658 = vadd.f32 %v655, %v656
        %v659 = vrot.slane %v658, 4
        %v660 = vadd.f32 %v658, %v659
        %v661 = vrot.slane %v660, 2
        %v662 = vadd.f32 %v660, %v661
        %v663 = vrot.slane %v662, 1
        %v664 = vadd.f32 %v662, %v663
        %v665 = vadd.f32 %v657, %v664
        %666 = vst [vmem:[%s9] sm:$0x1] %v665
        %v667 = vld [vmem:[%s9 + $0x1] sm:$0x1]
        %v668 = vmul.f32 %v655, %v655
        %v669 = vmul.f32 %v656, %v656
        %v670 = vadd.f32 %v668, %v669
        %v671 = vrot.slane %v670, 4
        %v672 = vadd.f32 %v670, %v671
        %v673 = vrot.slane %v672, 2
        %v674 = vadd.f32 %v672, %v673
        %v675 = vrot.slane %v674, 1
        %v676 = vadd.f32 %v674, %v675
        %v677 = vadd.f32 %v667, %v676
        %678 = vst [vmem:[%s9 + $0x1] sm:$0x1] %v677
      $region64: #{proxy_encoder_forward.2} parent=55 // pred_fallthru
        _
      %v679 = vld [vmem:[%s6] sm:$0xf]
      %v680 = vld [vmem:[%s6 + $0x4] sm:$0xf]
      %v681 = vld [vmem:[%s6 + $0x8] sm:$0xf]
      %v682 = vld [vmem:[%s6 + $0xc] sm:$0xf]
      %v683 = vld [vmem:[%s6 + $0x10] sm:$0xf]
      %v684 = vld [vmem:[%s6 + $0x14] sm:$0xf]
      %v685 = vld [vmem:[%s6 + $0x18] sm:$0xf]
      %v686 = vld [vmem:[%s6 + $0x1c] sm:$0xf]
      %v687 = vld [vmem:[%s6 + $0x20] sm:$0xf]
      %v688 = vld [vmem:[%s6 + $0x24] sm:$0xf]
      %v689 = vld [vmem:[%s6 + $0x28] sm:$0xf]
      %v690 = vld [vmem:[%s6 + $0x2c] sm:$0xf]
      %v691 = vld [vmem:[%s6 + $0x30] sm:$0xf]
      %v692 = vld [vmem:[%s6 + $0x34] sm:$0xf]
      %v693 = vld [vmem:[%s6 + $0x38] sm:$0xf]
      %v694 = vld [vmem:[%s6 + $0x3c] sm:$0xf]
      %v695 = vmul.f32 %v385, 0.125
      %v696 = vmul.f32 %v695, %v695
      %v698 = vrot.slane %v696, 7
      %v700 = vsub.f32 %v695, %v698
      %v701 = vmax.f32 %v700, 0.0
      %v702 = vlaneseq
      %v703 = vshrl.u32 %v702, 7
      %v704 = vsub.s32 0, %v703
      %v705 = vrot.slane %v695, %v704
      %v706 = vsub.f32 %v650, %v705
      %v707 = vsub.f32 %v651, %v705
      %v708 = vadd.f32 %v701, 1e-05
      %v709 = vrsqrt.pop %v708
      %v710 = vlaneseq
      %v711 = vshrl.u32 %v710, 7
      %v712 = vsub.s32 1, %v711
      %v713 = vrot.slane %v709, %v712
      %v714 = vmul.f32 %v706, %v713
      %v715 = vmul.f32 %v707, %v713
      %v716 = vlaneseq
      %v717 = vshrl.u32 %v716, 7
      %v718 = vsub.s32 0, %v717
      %v719 = vrot.slane %v384, %v718
      %v720 = vmul.f32 %v714, %v719
      %v721 = vmul.f32 %v715, %v719
      %v722 = vlaneseq
      %v723 = vshrl.u32 %v722, 7
      %v724 = vsub.s32 1, %v723
      %v725 = vrot.slane %v384, %v724
      %v726 = vadd.f32 %v720, %v725
      %v727 = vadd.f32 %v721, %v725
      %vm728 = vcmp.ge.f32.partialorder %v726, 0.0
      %vm729 = vcmp.ge.f32.partialorder %v727, 0.0
      %v730 = vmul.f32 %v726, 0.01
      %v731 = vmul.f32 %v727, 0.01
      %v732 = vsel %vm728, %v726, %v730
      %v733 = vsel %vm729, %v727, %v731
      %v734 = vpack.c.bf16 %v733, %v732
      %v751 = vunpack.c.l.b16 %v679
      %v752 = vunpack.c.l.b16 %v680
      %v753 = vunpack.c.l.b16 %v681
      %v754 = vunpack.c.l.b16 %v682
      %v755 = vunpack.c.l.b16 %v683
      %v756 = vunpack.c.l.b16 %v684
      %v757 = vunpack.c.l.b16 %v685
      %v758 = vunpack.c.l.b16 %v686
      %v759 = vunpack.c.l.b16 %v687
      %v760 = vunpack.c.l.b16 %v688
      %v761 = vunpack.c.l.b16 %v689
      %v762 = vunpack.c.l.b16 %v690
      %v763 = vunpack.c.l.b16 %v691
      %v764 = vunpack.c.l.b16 %v692
      %v765 = vunpack.c.l.b16 %v693
      %v766 = vunpack.c.l.b16 %v694
      %v767 = vpack.c.b16 %v752, %v751
      %v768 = vpack.c.b16 %v754, %v753
      %v769 = vpack.c.b16 %v756, %v755
      %v770 = vpack.c.b16 %v758, %v757
      %v771 = vpack.c.b16 %v760, %v759
      %v772 = vpack.c.b16 %v762, %v761
      %v773 = vpack.c.b16 %v764, %v763
      %v774 = vpack.c.b16 %v766, %v765
      %783 = vmatprep.subr.bf16.mxu0 0
      %784 = vmatpush1.bf16.msra.mxu0 %v767
      %785 = vmatprep.subr.bf16.mxu0 0
      %786 = vmatpush1.bf16.msra.mxu0 %v768
      %787 = vmatprep.subr.bf16.mxu0 0
      %788 = vmatpush1.bf16.msra.mxu0 %v769
      %789 = vmatprep.subr.bf16.mxu0 0
      %790 = vmatpush1.bf16.msra.mxu0 %v770
      %791 = vmatprep.subr.bf16.mxu0 0
      %792 = vmatpush1.bf16.msra.mxu0 %v771
      %793 = vmatprep.subr.bf16.mxu0 0
      %794 = vmatpush1.bf16.msra.mxu0 %v772
      %795 = vmatprep.subr.bf16.mxu0 0
      %796 = vmatpush1.bf16.msra.mxu0 %v773
      %797 = vmatprep.subr.bf16.mxu0 0
      %798 = vmatpush1.bf16.msra.mxu0 %v774
      %799 = vmatprep.subr.bf16.mxu0 0
      %800 = vmatpush1.bf16.msra.mxu0 0
      %801 = vmatprep.subr.bf16.mxu0 0
      %802 = vmatpush1.bf16.msra.mxu0 0
      %803 = vmatprep.subr.bf16.mxu0 0
      %804 = vmatpush1.bf16.msra.mxu0 0
      %805 = vmatprep.subr.bf16.mxu0 0
      %806 = vmatpush1.bf16.msra.mxu0 0
      %807 = vmatprep.subr.bf16.mxu0 0
      %808 = vmatpush1.bf16.msra.mxu0 0
      %809 = vmatprep.subr.bf16.mxu0 0
      %810 = vmatpush1.bf16.msra.mxu0 0
      %811 = vmatprep.subr.bf16.mxu0 0
      %812 = vmatpush1.bf16.msra.mxu0 0
      %813 = vmatprep.subr.bf16.mxu0 0
      %814 = vmatpush1.bf16.msra.mxu0 0
      %815 = vmatprep.mubr.bf16.mxu0 0
      %816 = vmatmul.mubr.bf16.gmra.mrb[0].mxu0 %v734
      %v817 = vpop.f32.mrb[0].mxu0
      %v818 = vadd.f32 0.0, %v817
      %v819 = vpop.f32.mrb[0].mxu0
      %v820 = vpop.f32.mrb[0].mxu0
      %v821 = vadd.f32 0.0, %v820
      %v822 = vpop.f32.mrb[0].mxu0
      %823 = vdwg.mxu0
      %p824 = scmp.eq.s32.totalorder %s24, 1
      // Predicated region
      $region65: #{proxy_encoder_forward.2} parent=55 // pred_check
        %p825 = pneg %p824
      $region66: #{proxy_encoder_forward.2} parent=55 // pred_check_branch
        %827 = sbr.rel (%p825) target = $region68
      $region67: #{proxy_encoder_forward.2} parent=55 // pred_region
        %v828 = vmul.f32 %v818, %v397
        %v829 = vmul.f32 %v821, %v398
        %v830 = vld [vmem:[%s9 + $0x2] sm:$0x1]
        %vm831 = vcmask 261120
        %v832 = vsel %vm831, %v828, 0.0
        %v833 = vsel %vm831, %v829, 0.0
        %v834 = vadd.f32 %v832, %v833
        %v835 = vrot.slane %v834, 4
        %v836 = vadd.f32 %v834, %v835
        %v837 = vrot.slane %v836, 2
        %v838 = vadd.f32 %v836, %v837
        %v839 = vrot.slane %v838, 1
        %v840 = vadd.f32 %v838, %v839
        %v841 = vadd.f32 %v830, %v840
        %vm842 = vcmask 253952
        %843 = vst.msk [vmem:[%s9 + $0x2] sm:$0x1] %vm842, %v841
        %v844 = vld [vmem:[%s9 + $0x3] sm:$0x1]
        %v845 = vmul.f32 %v828, %v828
        %v846 = vmul.f32 %v829, %v829
        %v847 = vsel %vm831, %v845, 0.0
        %v848 = vsel %vm831, %v846, 0.0
        %v849 = vadd.f32 %v847, %v848
        %v850 = vrot.slane %v849, 4
        %v851 = vadd.f32 %v849, %v850
        %v852 = vrot.slane %v851, 2
        %v853 = vadd.f32 %v851, %v852
        %v854 = vrot.slane %v853, 1
        %v855 = vadd.f32 %v853, %v854
        %v856 = vadd.f32 %v844, %v855
        %857 = vst.msk [vmem:[%s9 + $0x3] sm:$0x1] %vm842, %v856
      $region68: #{proxy_encoder_forward.2} parent=55 // pred_fallthru
        _
      %v858 = vld [vmem:[%s7] sm:$0xf]
      %v859 = vld [vmem:[%s7 + $0x4] sm:$0xf]
      %v860 = vld [vmem:[%s7 + $0x8] sm:$0xf]
      %v861 = vld [vmem:[%s7 + $0xc] sm:$0xf]
      %v862 = vlaneseq
      %v863 = vshrl.u32 %v862, 7
      %v864 = vsub.s32 2, %v863
      %v865 = vrot.slane %v695, %v864
      %v866 = vsub.f32 %v818, %v865
      %v867 = vsub.f32 %v821, %v865
      %v868 = vlaneseq
      %v869 = vshrl.u32 %v868, 7
      %v870 = vsub.s32 3, %v869
      %v871 = vrot.slane %v709, %v870
      %v872 = vmul.f32 %v866, %v871
      %v873 = vmul.f32 %v867, %v871
      %v874 = vlaneseq
      %v875 = vshrl.u32 %v874, 7
      %v876 = vsub.s32 2, %v875
      %v877 = vrot.slane %v384, %v876
      %v878 = vmul.f32 %v872, %v877
      %v879 = vmul.f32 %v873, %v877
      %v880 = vlaneseq
      %v881 = vshrl.u32 %v880, 7
      %v882 = vsub.s32 3, %v881
      %v883 = vrot.slane %v384, %v882
      %v884 = vadd.f32 %v878, %v883
      %v885 = vadd.f32 %v879, %v883
      %vm886 = vcmp.ge.f32.partialorder %v884, 0.0
      %vm887 = vcmp.ge.f32.partialorder %v885, 0.0
      %v888 = vmul.f32 %v884, 0.01
      %v889 = vmul.f32 %v885, 0.01
      %v890 = vsel %vm886, %v884, %v888
      %v891 = vsel %vm887, %v885, %v889
      %vm892 = vcmask 261120
      %v893 = vsel %vm892, %v890, 0.0
      %894 = vadd.xlane.f32.xlu0 %v893
      %v895 = vpop.xlane.xlu0 %894
      %v896 = vsel %vm892, %v891, 0.0
      %897 = vadd.xlane.f32.xlu0 %v896
      %v898 = vpop.xlane.xlu0 %897
      %v899 = vrcp.pop 32.0
      %v900 = vmul.f32 %v895, %v899
      %v901 = vmul.f32 %v898, %v899
      %v902 = vsub.f32 %v890, %v900
      %v903 = vsub.f32 %v891, %v901
      %v904 = vmul.f32 %v902, %v902
      %v905 = vmul.f32 %v903, %v903
      %v906 = vsel %vm892, %v904, 0.0
      %907 = vadd.xlane.f32.xlu0 %v906
      %v908 = vpop.xlane.xlu0 %907
      %v909 = vsel %vm892, %v905, 0.0
      %910 = vadd.xlane.f32.xlu0 %v909
      %v911 = vpop.xlane.xlu0 %910
      %v912 = vmul.f32 %v908, %v899
      %v913 = vmul.f32 %v911, %v899
      %v914 = vadd.f32 %v912, 1e-05
      %v915 = vadd.f32 %v913, 1e-05
      %v916 = vrsqrt.pop %v914
      %v917 = vrsqrt.pop %v915
      %v918 = vmul.f32 %v902, %v916
      %v919 = vmul.f32 %v903, %v917
      %v920 = vlaneseq
      %v921 = vshrl.u32 %v920, 7
      %v922 = vsub.s32 4, %v921
      %v923 = vrot.slane %v384, %v922
      %v924 = vmul.f32 %v918, %v923
      %v925 = vmul.f32 %v919, %v923
      %v926 = vlaneseq
      %v927 = vshrl.u32 %v926, 7
      %v928 = vsub.s32 5, %v927
      %v929 = vrot.slane %v384, %v928
      %v930 = vadd.f32 %v924, %v929
      %v931 = vadd.f32 %v925, %v929
      %v932 = vpack.c.bf16 %v931, %v930
      %v937 = vunpack.c.l.b16 %v858
      %v938 = vunpack.c.l.b16 %v859
      %v939 = vunpack.c.l.b16 %v860
      %v940 = vunpack.c.l.b16 %v861
      %v941 = vpack.c.b16 %v938, %v937
      %v942 = vpack.c.b16 %v940, %v939
      %v946 = vsel %vm892, %v932, 0
      %948 = vmatprep.subr.bf16.mxu0 0
      %949 = vmatpush1.bf16.msra.mxu0 %v941
      %950 = vmatprep.subr.bf16.mxu0 0
      %951 = vmatpush1.bf16.msra.mxu0 %v942
      %952 = vmatprep.subr.bf16.mxu0 0
      %953 = vmatpush1.bf16.msra.mxu0 0
      %954 = vmatprep.subr.bf16.mxu0 0
      %955 = vmatpush1.bf16.msra.mxu0 0
      %956 = vmatprep.subr.bf16.mxu0 0
      %957 = vmatpush1.bf16.msra.mxu0 0
      %958 = vmatprep.subr.bf16.mxu0 0
      %959 = vmatpush1.bf16.msra.mxu0 0
      %960 = vmatprep.subr.bf16.mxu0 0
      %961 = vmatpush1.bf16.msra.mxu0 0
      %962 = vmatprep.subr.bf16.mxu0 0
      %963 = vmatpush1.bf16.msra.mxu0 0
      %964 = vmatprep.subr.bf16.mxu0 0
      %965 = vmatpush1.bf16.msra.mxu0 0
      %966 = vmatprep.subr.bf16.mxu0 0
      %967 = vmatpush1.bf16.msra.mxu0 0
      %968 = vmatprep.subr.bf16.mxu0 0
      %969 = vmatpush1.bf16.msra.mxu0 0
      %970 = vmatprep.subr.bf16.mxu0 0
      %971 = vmatpush1.bf16.msra.mxu0 0
      %972 = vmatprep.subr.bf16.mxu0 0
      %973 = vmatpush1.bf16.msra.mxu0 0
      %974 = vmatprep.subr.bf16.mxu0 0
      %975 = vmatpush1.bf16.msra.mxu0 0
      %976 = vmatprep.subr.bf16.mxu0 0
      %977 = vmatpush1.bf16.msra.mxu0 0
      %978 = vmatprep.subr.bf16.mxu0 0
      %979 = vmatpush1.bf16.msra.mxu0 0
      %980 = vmatprep.mubr.bf16.mxu0 0
      %981 = vmatmul.mubr.bf16.gmra.mrb[0].mxu0 %v946
      %v982 = vpop.f32.mrb[0].mxu0
      %v983 = vadd.f32 0.0, %v982
      %v984 = vpop.f32.mrb[0].mxu0
      %v985 = vpop.f32.mrb[0].mxu0
      %v986 = vadd.f32 0.0, %v985
      %v987 = vpop.f32.mrb[0].mxu0
      %988 = vdwg.mxu0
      %p989 = scmp.eq.s32.totalorder %s24, 2
      // Predicated region
      $region69: #{proxy_encoder_forward.2} parent=55 // pred_check
        %p990 = pneg %p989
      $region70: #{proxy_encoder_forward.2} parent=55 // pred_check_branch
        %992 = sbr.rel (%p990) target = $region72
      $region71: #{proxy_encoder_forward.2} parent=55 // pred_region
        %v993 = vmul.f32 %v983, %v397
        %v994 = vmul.f32 %v986, %v398
        %v995 = vld [vmem:[%s9 + $0x4] sm:$0x1]
        %v996 = vadd.f32 %v993, %v994
        %v997 = vrot.slane %v996, 4
        %v998 = vadd.f32 %v996, %v997
        %v999 = vrot.slane %v998, 2
        %v1000 = vadd.f32 %v998, %v999
        %v1001 = vrot.slane %v1000, 1
        %v1002 = vadd.f32 %v1000, %v1001
        %v1003 = vadd.f32 %v995, %v1002
        %1004 = vst [vmem:[%s9 + $0x4] sm:$0x1] %v1003
        %v1005 = vld [vmem:[%s9 + $0x5] sm:$0x1]
        %v1006 = vmul.f32 %v993, %v993
        %v1007 = vmul.f32 %v994, %v994
        %v1008 = vadd.f32 %v1006, %v1007
        %v1009 = vrot.slane %v1008, 4
        %v1010 = vadd.f32 %v1008, %v1009
        %v1011 = vrot.slane %v1010, 2
        %v1012 = vadd.f32 %v1010, %v1011
        %v1013 = vrot.slane %v1012, 1
        %v1014 = vadd.f32 %v1012, %v1013
        %v1015 = vadd.f32 %v1005, %v1014
        %1016 = vst [vmem:[%s9 + $0x5] sm:$0x1] %v1015
      $region72: #{proxy_encoder_forward.2} parent=55 // pred_fallthru
        _
      // Predicated region
      $region73: #{proxy_encoder_forward.2} parent=55 // pred_check
        %p1017 = pneg %p249
      $region74: #{proxy_encoder_forward.2} parent=55 // pred_check_branch
        %1019 = sbr.rel (%p1017) target = $region76
      $region75: #{proxy_encoder_forward.2} parent=55 // pred_region
        _
      $region76: #{proxy_encoder_forward.2} parent=55 // pred_fallthru
        _
      // Predicated region
      $region77: #{proxy_encoder_forward.2} parent=55 // pred_check
        %p1020 = pneg %p249
      $region78: #{proxy_encoder_forward.2} parent=55 // pred_check_branch
        %1022 = sbr.rel (%p1020) target = $region80
      $region79: #{proxy_encoder_forward.2} parent=55 // pred_region
        _
      $region80: #{proxy_encoder_forward.2} parent=55 // pred_fallthru
        _
    $region56: #{proxy_encoder_forward.2} parent=5 // pred_fallthru
      _
    %p1023 = scmp.le.s32.totalorder 2, %s15
    // Predicated region
    $region81: #{proxy_encoder_forward.2} parent=5 // pred_check
      %p1024 = pneg %p1023
    $region82: #{proxy_encoder_forward.2} parent=5 // pred_check_branch
      %1026 = sbr.rel (%p1024) target = $region84
    $region83: #{proxy_encoder_forward.2} parent=5 // pred_region
      %s1027 = ssub.s32 %s15, 2
    $region84: #{proxy_encoder_forward.2} parent=5 // pred_fallthru
      _
  $region6: #{proxy_encoder_forward.2} parent=0 // loop_footer
    %s19 = sadd.s32 1, %s15
  $region7: #{proxy_encoder_forward.2} parent=0 // loop_footer_branch
    %14 = sbr.rel target = $region3
  $region8: #{proxy_encoder_forward.2} parent=0 // loop_exit
    _

// kernel: proxy_encoder_forward.3
$region0: #{proxy_encoder_forward.3}
  #allocation0 [shape = 'u32[]', space=smem, size = 0x4, offset = 0x4, fixed_abs, tag = 'smem constant byte address 0x4 - core index']
  #allocation1 [shape = 'u32[144,128]{1,0:T(1,128)}', space=vmem, size = 0x12000, scoped, tag = 'internal scratch']
  %s0 = inlined_call_operand.vmem [shape: bf16[16,75], index: 0, kind: input, shape index: {}]
  %s1 = inlined_call_operand.vmem [shape: bf16[16,75], index: 1, kind: input, shape index: {}]
  %s2 = inlined_call_operand.vmem [shape: bf16[16,5], index: 2, kind: input, shape index: {}]
  %s3 = inlined_call_operand.vmem [shape: bf16[75,128], index: 3, kind: input, shape index: {}]
  %s4 = inlined_call_operand.vmem [shape: bf16[75,128], index: 4, kind: input, shape index: {}]
  %s5 = inlined_call_operand.vmem [shape: bf16[5,128], index: 5, kind: input, shape index: {}]
  %s6 = inlined_call_operand.vmem [shape: bf16[128,32], index: 6, kind: input, shape index: {}]
  %s7 = inlined_call_operand.vmem [shape: bf16[32,128], index: 7, kind: input, shape index: {}]
  %s8 = inlined_call_operand.vmem [shape: f32[8,128], index: 8, kind: input, shape index: {}]
  %s9 = inlined_call_operand.vmem [shape: f32[8,128], index: 9, kind: input, shape index: {}]
  %s10 = inlined_call_operand.vmem [shape: f32[16,128], index: 10, kind: output, shape index: {}]
  %s11 = sld [smem:[#allocation0]]
  $region50: #{proxy_encoder_forward.3} parent=0
    _
  %s13 = ssub.s32 1, %s11
  %s14 = scalar_select 0, %s13, %s11
  // Predicated region
  $region2: #{proxy_encoder_forward.3} parent=0 // pred_check
    _
  $region3: #{proxy_encoder_forward.3} parent=0 // pred_check_branch
    %16 = sbr.rel (0) target = $region5
  $region4: #{proxy_encoder_forward.3} parent=0 // pred_region
    _
  $region5: #{proxy_encoder_forward.3} parent=0 // pred_fallthru
    _
  // Predicated region
  $region6: #{proxy_encoder_forward.3} parent=0 // pred_check
    _
  $region7: #{proxy_encoder_forward.3} parent=0 // pred_check_branch
    %18 = sbr.rel (0) target = $region9
  $region8: #{proxy_encoder_forward.3} parent=0 // pred_region
    _
  $region9: #{proxy_encoder_forward.3} parent=0 // pred_fallthru
    _
  // Predicated region
  $region10: #{proxy_encoder_forward.3} parent=0 // pred_check
    _
  $region11: #{proxy_encoder_forward.3} parent=0 // pred_check_branch
    %20 = sbr.rel (0) target = $region13
  $region12: #{proxy_encoder_forward.3} parent=0 // pred_region
    _
  $region13: #{proxy_encoder_forward.3} parent=0 // pred_fallthru
    _
  // Predicated region
  $region14: #{proxy_encoder_forward.3} parent=0 // pred_check
    _
  $region15: #{proxy_encoder_forward.3} parent=0 // pred_check_branch
    %22 = sbr.rel (0) target = $region17
  $region16: #{proxy_encoder_forward.3} parent=0 // pred_region
    _
  $region17: #{proxy_encoder_forward.3} parent=0 // pred_fallthru
    _
  // Predicated region
  $region18: #{proxy_encoder_forward.3} parent=0 // pred_check
    _
  $region19: #{proxy_encoder_forward.3} parent=0 // pred_check_branch
    %24 = sbr.rel (0) target = $region21
  $region20: #{proxy_encoder_forward.3} parent=0 // pred_region
    _
  $region21: #{proxy_encoder_forward.3} parent=0 // pred_fallthru
    _
  // Predicated region
  $region22: #{proxy_encoder_forward.3} parent=0 // pred_check
    _
  $region23: #{proxy_encoder_forward.3} parent=0 // pred_check_branch
    %26 = sbr.rel (0) target = $region25
  $region24: #{proxy_encoder_forward.3} parent=0 // pred_region
    _
  $region25: #{proxy_encoder_forward.3} parent=0 // pred_fallthru
    _
  // Predicated region
  $region26: #{proxy_encoder_forward.3} parent=0 // pred_check
    _
  $region27: #{proxy_encoder_forward.3} parent=0 // pred_check_branch
    %28 = sbr.rel (0) target = $region29
  $region28: #{proxy_encoder_forward.3} parent=0 // pred_region
    _
  $region29: #{proxy_encoder_forward.3} parent=0 // pred_fallthru
    _
  // Predicated region
  $region30: #{proxy_encoder_forward.3} parent=0 // pred_check
    _
  $region31: #{proxy_encoder_forward.3} parent=0 // pred_check_branch
    %30 = sbr.rel (0) target = $region33
  $region32: #{proxy_encoder_forward.3} parent=0 // pred_region
    _
  $region33: #{proxy_encoder_forward.3} parent=0 // pred_fallthru
    _
  // Predicated region
  $region34: #{proxy_encoder_forward.3} parent=0 // pred_check
    _
  $region35: #{proxy_encoder_forward.3} parent=0 // pred_check_branch
    %32 = sbr.rel (0) target = $region37
  $region36: #{proxy_encoder_forward.3} parent=0 // pred_region
    _
  $region37: #{proxy_encoder_forward.3} parent=0 // pred_fallthru
    _
  // Predicated region
  $region38: #{proxy_encoder_forward.3} parent=0 // pred_check
    _
  $region39: #{proxy_encoder_forward.3} parent=0 // pred_check_branch
    %34 = sbr.rel (0) target = $region41
  $region40: #{proxy_encoder_forward.3} parent=0 // pred_region
    _
  $region41: #{proxy_encoder_forward.3} parent=0 // pred_fallthru
    _
  %v36 = vld [vmem:[%s8] sm:$0xff]
  %v37 = vld [vmem:[%s9] sm:$0xff]
  %v38 = vld [vmem:[%s0] sm:$0xf]
  %v39 = vld [vmem:[%s0 + $0x4] sm:$0xf]
  %v40 = vld [vmem:[%s1] sm:$0xf]
  %v41 = vld [vmem:[%s1 + $0x4] sm:$0xf]
  %v42 = vld [vmem:[%s2] sm:$0xf]
  %v43 = vld [vmem:[%s2 + $0x4] sm:$0xf]
  %v44 = vld [vmem:[%s3] sm:$0xf]
  %v45 = vld [vmem:[%s3 + $0x4] sm:$0xf]
  %v46 = vld [vmem:[%s3 + $0x8] sm:$0xf]
  %v47 = vld [vmem:[%s3 + $0xc] sm:$0xf]
  %v48 = vld [vmem:[%s3 + $0x10] sm:$0xf]
  %v49 = vld [vmem:[%s3 + $0x14] sm:$0xf]
  %v50 = vld [vmem:[%s3 + $0x18] sm:$0xf]
  %v51 = vld [vmem:[%s3 + $0x1c] sm:$0xf]
  %v52 = vld [vmem:[%s3 + $0x20] sm:$0xf]
  %v53 = vld [vmem:[%s3 + $0x24] sm:$0x3]
  %v54 = vld [vmem:[%s4] sm:$0xf]
  %v55 = vld [vmem:[%s4 + $0x4] sm:$0xf]
  %v56 = vld [vmem:[%s4 + $0x8] sm:$0xf]
  %v57 = vld [vmem:[%s4 + $0xc] sm:$0xf]
  %v58 = vld [vmem:[%s4 + $0x10] sm:$0xf]
  %v59 = vld [vmem:[%s4 + $0x14] sm:$0xf]
  %v60 = vld [vmem:[%s4 + $0x18] sm:$0xf]
  %v61 = vld [vmem:[%s4 + $0x1c] sm:$0xf]
  %v62 = vld [vmem:[%s4 + $0x20] sm:$0xf]
  %v63 = vld [vmem:[%s4 + $0x24] sm:$0x3]
  %v64 = vld [vmem:[%s5] sm:$0x7]
  %v67 = vunpack.c.l.b16 %v40
  %v68 = vunpack.c.l.b16 %v41
  %v69 = vpack.c.b16 %v68, %v67
  %v80 = vunpack.c.l.b16 %v54
  %v81 = vunpack.c.l.b16 %v55
  %v82 = vunpack.c.l.b16 %v56
  %v83 = vunpack.c.l.b16 %v57
  %v84 = vunpack.c.l.b16 %v58
  %v85 = vunpack.c.l.b16 %v59
  %v86 = vunpack.c.l.b16 %v60
  %v87 = vunpack.c.l.b16 %v61
  %v88 = vunpack.c.l.b16 %v62
  %v89 = vunpack.c.l.b16 %v63
  %v90 = vpack.c.b16 %v81, %v80
  %v91 = vpack.c.b16 %v83, %v82
  %v92 = vpack.c.b16 %v85, %v84
  %v93 = vpack.c.b16 %v87, %v86
  %v94 = vpack.c.b16 %v89, %v88
  %vm99 = vcmask 613376
  %v101 = vsel %vm99, %v69, 0
  %vm103 = vcmask 1044480
  %vm104 = vcmask 1045504
  %v105 = vsel %vm103, 4294967295, 65535
  %v106 = vsel %vm104, %v105, 0
  %v108 = vand.u32 %v94, %v106
  %110 = vmatprep.subr.bf16.mxu0 0
  %111 = vmatpush1.bf16.msra.mxu0 %v90
  %112 = vmatprep.subr.bf16.mxu0 0
  %113 = vmatpush1.bf16.msra.mxu0 %v91
  %114 = vmatprep.subr.bf16.mxu0 0
  %115 = vmatpush1.bf16.msra.mxu0 %v92
  %116 = vmatprep.subr.bf16.mxu0 0
  %117 = vmatpush1.bf16.msra.mxu0 %v93
  %118 = vmatprep.subr.bf16.mxu0 0
  %119 = vmatpush1.bf16.msra.mxu0 %v108
  %120 = vmatprep.subr.bf16.mxu0 0
  %121 = vmatpush1.bf16.msra.mxu0 0
  %122 = vmatprep.subr.bf16.mxu0 0
  %123 = vmatpush1.bf16.msra.mxu0 0
  %124 = vmatprep.subr.bf16.mxu0 0
  %125 = vmatpush1.bf16.msra.mxu0 0
  %126 = vmatprep.subr.bf16.mxu0 0
  %127 = vmatpush1.bf16.msra.mxu0 0
  %128 = vmatprep.subr.bf16.mxu0 0
  %129 = vmatpush1.bf16.msra.mxu0 0
  %130 = vmatprep.subr.bf16.mxu0 0
  %131 = vmatpush1.bf16.msra.mxu0 0
  %132 = vmatprep.subr.bf16.mxu0 0
  %133 = vmatpush1.bf16.msra.mxu0 0
  %134 = vmatprep.subr.bf16.mxu0 0
  %135 = vmatpush1.bf16.msra.mxu0 0
  %136 = vmatprep.subr.bf16.mxu0 0
  %137 = vmatpush1.bf16.msra.mxu0 0
  %138 = vmatprep.subr.bf16.mxu0 0
  %139 = vmatpush1.bf16.msra.mxu0 0
  %140 = vmatprep.subr.bf16.mxu0 0
  %141 = vmatpush1.bf16.msra.mxu0 0
  %142 = vmatprep.mubr.bf16.mxu0 0
  %143 = vmatmul.mubr.bf16.gmra.mrb[0].mxu0 %v101
  %v144 = vpop.f32.mrb[0].mxu0
  %v145 = vadd.f32 0.0, %v144
  %v146 = vpop.f32.mrb[0].mxu0
  %v147 = vpop.f32.mrb[0].mxu0
  %v148 = vadd.f32 0.0, %v147
  %v149 = vpop.f32.mrb[0].mxu0
  %150 = vdwg.mxu0
  %v153 = vunpack.c.l.b16 %v38
  %v154 = vunpack.c.l.b16 %v39
  %v155 = vpack.c.b16 %v154, %v153
  %v166 = vunpack.c.l.b16 %v44
  %v167 = vunpack.c.l.b16 %v45
  %v168 = vunpack.c.l.b16 %v46
  %v169 = vunpack.c.l.b16 %v47
  %v170 = vunpack.c.l.b16 %v48
  %v171 = vunpack.c.l.b16 %v49
  %v172 = vunpack.c.l.b16 %v50
  %v173 = vunpack.c.l.b16 %v51
  %v174 = vunpack.c.l.b16 %v52
  %v175 = vunpack.c.l.b16 %v53
  %v176 = vpack.c.b16 %v167, %v166
  %v177 = vpack.c.b16 %v169, %v168
  %v178 = vpack.c.b16 %v171, %v170
  %v179 = vpack.c.b16 %v173, %v172
  %v180 = vpack.c.b16 %v175, %v174
  %v186 = vsel %vm99, %v155, 0
  %v189 = vand.u32 %v180, %v106
  %191 = vmatprep.subr.bf16.mxu0 0
  %192 = vmatpush1.bf16.msra.mxu0 %v176
  %193 = vmatprep.subr.bf16.mxu0 0
  %194 = vmatpush1.bf16.msra.mxu0 %v177
  %195 = vmatprep.subr.bf16.mxu0 0
  %196 = vmatpush1.bf16.msra.mxu0 %v178
  %197 = vmatprep.subr.bf16.mxu0 0
  %198 = vmatpush1.bf16.msra.mxu0 %v179
  %199 = vmatprep.subr.bf16.mxu0 0
  %200 = vmatpush1.bf16.msra.mxu0 %v189
  %201 = vmatprep.subr.bf16.mxu0 0
  %202 = vmatpush1.bf16.msra.mxu0 0
  %203 = vmatprep.subr.bf16.mxu0 0
  %204 = vmatpush1.bf16.msra.mxu0 0
  %205 = vmatprep.subr.bf16.mxu0 0
  %206 = vmatpush1.bf16.msra.mxu0 0
  %207 = vmatprep.subr.bf16.mxu0 0
  %208 = vmatpush1.bf16.msra.mxu0 0
  %209 = vmatprep.subr.bf16.mxu0 0
  %210 = vmatpush1.bf16.msra.mxu0 0
  %211 = vmatprep.subr.bf16.mxu0 0
  %212 = vmatpush1.bf16.msra.mxu0 0
  %213 = vmatprep.subr.bf16.mxu0 0
  %214 = vmatpush1.bf16.msra.mxu0 0
  %215 = vmatprep.subr.bf16.mxu0 0
  %216 = vmatpush1.bf16.msra.mxu0 0
  %217 = vmatprep.subr.bf16.mxu0 0
  %218 = vmatpush1.bf16.msra.mxu0 0
  %219 = vmatprep.subr.bf16.mxu0 0
  %220 = vmatpush1.bf16.msra.mxu0 0
  %221 = vmatprep.subr.bf16.mxu0 0
  %222 = vmatpush1.bf16.msra.mxu0 0
  %223 = vmatprep.mubr.bf16.mxu0 0
  %224 = vmatmul.mubr.bf16.gmra.mrb[0].mxu0 %v186
  %v225 = vpop.f32.mrb[0].mxu0
  %v226 = vadd.f32 %v145, %v225
  %v227 = vpop.f32.mrb[0].mxu0
  %v228 = vpop.f32.mrb[0].mxu0
  %v229 = vadd.f32 %v148, %v228
  %v230 = vpop.f32.mrb[0].mxu0
  %231 = vdwg.mxu0
  %v234 = vunpack.c.l.b16 %v42
  %v235 = vunpack.c.l.b16 %v43
  %v236 = vpack.c.b16 %v235, %v234
  %vm237 = vcmask 39936
  %v239 = vsel %vm237, %v236, 0
  %vm241 = vcmask 1041408
  %vm242 = vcmask 1042432
  %v243 = vsel %vm241, 4294967295, 65535
  %v244 = vsel %vm242, %v243, 0
  %v246 = vand.u32 %v64, %v244
  %248 = vmatprep.subr.bf16.mxu0 0
  %249 = vmatpush1.bf16.msra.mxu0 %v246
  %250 = vmatprep.subr.bf16.mxu0 0
  %251 = vmatpush1.bf16.msra.mxu0 0
  %252 = vmatprep.subr.bf16.mxu0 0
  %253 = vmatpush1.bf16.msra.mxu0 0
  %254 = vmatprep.subr.bf16.mxu0 0
  %255 = vmatpush1.bf16.msra.mxu0 0
  %256 = vmatprep.subr.bf16.mxu0 0
  %257 = vmatpush1.bf16.msra.mxu0 0
  %258 = vmatprep.subr.bf16.mxu0 0
  %259 = vmatpush1.bf16.msra.mxu0 0
  %260 = vmatprep.subr.bf16.mxu0 0
  %261 = vmatpush1.bf16.msra.mxu0 0
  %262 = vmatprep.subr.bf16.mxu0 0
  %263 = vmatpush1.bf16.msra.mxu0 0
  %264 = vmatprep.subr.bf16.mxu0 0
  %265 = vmatpush1.bf16.msra.mxu0 0
  %266 = vmatprep.subr.bf16.mxu0 0
  %267 = vmatpush1.bf16.msra.mxu0 0
  %268 = vmatprep.subr.bf16.mxu0 0
  %269 = vmatpush1.bf16.msra.mxu0 0
  %270 = vmatprep.subr.bf16.mxu0 0
  %271 = vmatpush1.bf16.msra.mxu0 0
  %272 = vmatprep.subr.bf16.mxu0 0
  %273 = vmatpush1.bf16.msra.mxu0 0
  %274 = vmatprep.subr.bf16.mxu0 0
  %275 = vmatpush1.bf16.msra.mxu0 0
  %276 = vmatprep.subr.bf16.mxu0 0
  %277 = vmatpush1.bf16.msra.mxu0 0
  %278 = vmatprep.subr.bf16.mxu0 0
  %279 = vmatpush1.bf16.msra.mxu0 0
  %280 = vmatprep.mubr.bf16.mxu0 0
  %281 = vmatmul.mubr.bf16.gmra.mrb[0].mxu0 %v239
  %v282 = vpop.f32.mrb[0].mxu0
  %v283 = vadd.f32 0.0, %v282
  %v284 = vpop.f32.mrb[0].mxu0
  %v285 = vpop.f32.mrb[0].mxu0
  %v286 = vadd.f32 0.0, %v285
  %v287 = vpop.f32.mrb[0].mxu0
  %288 = vdwg.mxu0
  %v289 = vadd.f32 %v226, %v283
  %v290 = vadd.f32 %v229, %v286
  %v291 = vld [vmem:[%s6] sm:$0xf]
  %v292 = vld [vmem:[%s6 + $0x4] sm:$0xf]
  %v293 = vld [vmem:[%s6 + $0x8] sm:$0xf]
  %v294 = vld [vmem:[%s6 + $0xc] sm:$0xf]
  %v295 = vld [vmem:[%s6 + $0x10] sm:$0xf]
  %v296 = vld [vmem:[%s6 + $0x14] sm:$0xf]
  %v297 = vld [vmem:[%s6 + $0x18] sm:$0xf]
  %v298 = vld [vmem:[%s6 + $0x1c] sm:$0xf]
  %v299 = vld [vmem:[%s6 + $0x20] sm:$0xf]
  %v300 = vld [vmem:[%s6 + $0x24] sm:$0xf]
  %v301 = vld [vmem:[%s6 + $0x28] sm:$0xf]
  %v302 = vld [vmem:[%s6 + $0x2c] sm:$0xf]
  %v303 = vld [vmem:[%s6 + $0x30] sm:$0xf]
  %v304 = vld [vmem:[%s6 + $0x34] sm:$0xf]
  %v305 = vld [vmem:[%s6 + $0x38] sm:$0xf]
  %v306 = vld [vmem:[%s6 + $0x3c] sm:$0xf]
  %v307 = vmul.f32 %v37, 0.125
  %v308 = vmul.f32 %v307, %v307
  %v310 = vrot.slane %v308, 7
  %v312 = vsub.f32 %v307, %v310
  %v313 = vmax.f32 %v312, 0.0
  %v314 = vlaneseq
  %v315 = vshrl.u32 %v314, 7
  %v316 = vsub.s32 0, %v315
  %v317 = vrot.slane %v307, %v316
  %v318 = vsub.f32 %v289, %v317
  %v319 = vsub.f32 %v290, %v317
  %v320 = vadd.f32 %v313, 1e-05
  %v321 = vrsqrt.pop %v320
  %v322 = vlaneseq
  %v323 = vshrl.u32 %v322, 7
  %v324 = vsub.s32 1, %v323
  %v325 = vrot.slane %v321, %v324
  %v326 = vmul.f32 %v318, %v325
  %v327 = vmul.f32 %v319, %v325
  %v328 = vlaneseq
  %v329 = vshrl.u32 %v328, 7
  %v330 = vsub.s32 0, %v329
  %v331 = vrot.slane %v36, %v330
  %v332 = vmul.f32 %v326, %v331
  %v333 = vmul.f32 %v327, %v331
  %v334 = vlaneseq
  %v335 = vshrl.u32 %v334, 7
  %v336 = vsub.s32 1, %v335
  %v337 = vrot.slane %v36, %v336
  %v338 = vadd.f32 %v332, %v337
  %v339 = vadd.f32 %v333, %v337
  %vm340 = vcmp.ge.f32.partialorder %v338, 0.0
  %vm341 = vcmp.ge.f32.partialorder %v339, 0.0
  %v342 = vmul.f32 %v338, 0.01
  %v343 = vmul.f32 %v339, 0.01
  %v344 = vsel %vm340, %v338, %v342
  %v345 = vsel %vm341, %v339, %v343
  %v346 = vpack.c.bf16 %v345, %v344
  %v363 = vunpack.c.l.b16 %v291
  %v364 = vunpack.c.l.b16 %v292
  %v365 = vunpack.c.l.b16 %v293
  %v366 = vunpack.c.l.b16 %v294
  %v367 = vunpack.c.l.b16 %v295
  %v368 = vunpack.c.l.b16 %v296
  %v369 = vunpack.c.l.b16 %v297
  %v370 = vunpack.c.l.b16 %v298
  %v371 = vunpack.c.l.b16 %v299
  %v372 = vunpack.c.l.b16 %v300
  %v373 = vunpack.c.l.b16 %v301
  %v374 = vunpack.c.l.b16 %v302
  %v375 = vunpack.c.l.b16 %v303
  %v376 = vunpack.c.l.b16 %v304
  %v377 = vunpack.c.l.b16 %v305
  %v378 = vunpack.c.l.b16 %v306
  %v379 = vpack.c.b16 %v364, %v363
  %v380 = vpack.c.b16 %v366, %v365
  %v381 = vpack.c.b16 %v368, %v367
  %v382 = vpack.c.b16 %v370, %v369
  %v383 = vpack.c.b16 %v372, %v371
  %v384 = vpack.c.b16 %v374, %v373
  %v385 = vpack.c.b16 %v376, %v375
  %v386 = vpack.c.b16 %v378, %v377
  %395 = vmatprep.subr.bf16.mxu0 0
  %396 = vmatpush1.bf16.msra.mxu0 %v379
  %397 = vmatprep.subr.bf16.mxu0 0
  %398 = vmatpush1.bf16.msra.mxu0 %v380
  %399 = vmatprep.subr.bf16.mxu0 0
  %400 = vmatpush1.bf16.msra.mxu0 %v381
  %401 = vmatprep.subr.bf16.mxu0 0
  %402 = vmatpush1.bf16.msra.mxu0 %v382
  %403 = vmatprep.subr.bf16.mxu0 0
  %404 = vmatpush1.bf16.msra.mxu0 %v383
  %405 = vmatprep.subr.bf16.mxu0 0
  %406 = vmatpush1.bf16.msra.mxu0 %v384
  %407 = vmatprep.subr.bf16.mxu0 0
  %408 = vmatpush1.bf16.msra.mxu0 %v385
  %409 = vmatprep.subr.bf16.mxu0 0
  %410 = vmatpush1.bf16.msra.mxu0 %v386
  %411 = vmatprep.subr.bf16.mxu0 0
  %412 = vmatpush1.bf16.msra.mxu0 0
  %413 = vmatprep.subr.bf16.mxu0 0
  %414 = vmatpush1.bf16.msra.mxu0 0
  %415 = vmatprep.subr.bf16.mxu0 0
  %416 = vmatpush1.bf16.msra.mxu0 0
  %417 = vmatprep.subr.bf16.mxu0 0
  %418 = vmatpush1.bf16.msra.mxu0 0
  %419 = vmatprep.subr.bf16.mxu0 0
  %420 = vmatpush1.bf16.msra.mxu0 0
  %421 = vmatprep.subr.bf16.mxu0 0
  %422 = vmatpush1.bf16.msra.mxu0 0
  %423 = vmatprep.subr.bf16.mxu0 0
  %424 = vmatpush1.bf16.msra.mxu0 0
  %425 = vmatprep.subr.bf16.mxu0 0
  %426 = vmatpush1.bf16.msra.mxu0 0
  %427 = vmatprep.mubr.bf16.mxu0 0
  %428 = vmatmul.mubr.bf16.gmra.mrb[0].mxu0 %v346
  %v429 = vpop.f32.mrb[0].mxu0
  %v430 = vadd.f32 0.0, %v429
  %v431 = vpop.f32.mrb[0].mxu0
  %v432 = vpop.f32.mrb[0].mxu0
  %v433 = vadd.f32 0.0, %v432
  %v434 = vpop.f32.mrb[0].mxu0
  %435 = vdwg.mxu0
  %v436 = vld [vmem:[%s7] sm:$0xf]
  %v437 = vld [vmem:[%s7 + $0x4] sm:$0xf]
  %v438 = vld [vmem:[%s7 + $0x8] sm:$0xf]
  %v439 = vld [vmem:[%s7 + $0xc] sm:$0xf]
  %v440 = vlaneseq
  %v441 = vshrl.u32 %v440, 7
  %v442 = vsub.s32 2, %v441
  %v443 = vrot.slane %v307, %v442
  %v444 = vsub.f32 %v430, %v443
  %v445 = vsub.f32 %v433, %v443
  %v446 = vlaneseq
  %v447 = vshrl.u32 %v446, 7
  %v448 = vsub.s32 3, %v447
  %v449 = vrot.slane %v321, %v448
  %v450 = vmul.f32 %v444, %v449
  %v451 = vmul.f32 %v445, %v449
  %v452 = vlaneseq
  %v453 = vshrl.u32 %v452, 7
  %v454 = vsub.s32 2, %v453
  %v455 = vrot.slane %v36, %v454
  %v456 = vmul.f32 %v450, %v455
  %v457 = vmul.f32 %v451, %v455
  %v458 = vlaneseq
  %v459 = vshrl.u32 %v458, 7
  %v460 = vsub.s32 3, %v459
  %v461 = vrot.slane %v36, %v460
  %v462 = vadd.f32 %v456, %v461
  %v463 = vadd.f32 %v457, %v461
  %vm464 = vcmp.ge.f32.partialorder %v462, 0.0
  %vm465 = vcmp.ge.f32.partialorder %v463, 0.0
  %v466 = vmul.f32 %v462, 0.01
  %v467 = vmul.f32 %v463, 0.01
  %v468 = vsel %vm464, %v462, %v466
  %v469 = vsel %vm465, %v463, %v467
  %vm470 = vcmask 261120
  %v471 = vsel %vm470, %v468, 0.0
  %472 = vadd.xlane.f32.xlu0 %v471
  %v473 = vpop.xlane.xlu0 %472
  %v474 = vsel %vm470, %v469, 0.0
  %475 = vadd.xlane.f32.xlu0 %v474
  %v476 = vpop.xlane.xlu0 %475
  %v477 = vrcp.pop 32.0
  %v478 = vmul.f32 %v473, %v477
  %v479 = vmul.f32 %v476, %v477
  %v480 = vsub.f32 %v468, %v478
  %v481 = vsub.f32 %v469, %v479
  %v482 = vmul.f32 %v480, %v480
  %v483 = vmul.f32 %v481, %v481
  %v484 = vsel %vm470, %v482, 0.0
  %485 = vadd.xlane.f32.xlu0 %v484
  %v486 = vpop.xlane.xlu0 %485
  %v487 = vsel %vm470, %v483, 0.0
  %488 = vadd.xlane.f32.xlu0 %v487
  %v489 = vpop.xlane.xlu0 %488
  %v490 = vmul.f32 %v486, %v477
  %v491 = vmul.f32 %v489, %v477
  %v492 = vadd.f32 %v490, 1e-05
  %v493 = vadd.f32 %v491, 1e-05
  %v494 = vrsqrt.pop %v492
  %v495 = vrsqrt.pop %v493
  %v496 = vmul.f32 %v480, %v494
  %v497 = vmul.f32 %v481, %v495
  %v498 = vlaneseq
  %v499 = vshrl.u32 %v498, 7
  %v500 = vsub.s32 4, %v499
  %v501 = vrot.slane %v36, %v500
  %v502 = vmul.f32 %v496, %v501
  %v503 = vmul.f32 %v497, %v501
  %v504 = vlaneseq
  %v505 = vshrl.u32 %v504, 7
  %v506 = vsub.s32 5, %v505
  %v507 = vrot.slane %v36, %v506
  %v508 = vadd.f32 %v502, %v507
  %v509 = vadd.f32 %v503, %v507
  %v510 = vpack.c.bf16 %v509, %v508
  %v515 = vunpack.c.l.b16 %v436
  %v516 = vunpack.c.l.b16 %v437
  %v517 = vunpack.c.l.b16 %v438
  %v518 = vunpack.c.l.b16 %v439
  %v519 = vpack.c.b16 %v516, %v515
  %v520 = vpack.c.b16 %v518, %v517
  %v524 = vsel %vm470, %v510, 0
  %526 = vmatprep.subr.bf16.mxu0 0
  %527 = vmatpush1.bf16.msra.mxu0 %v519
  %528 = vmatprep.subr.bf16.mxu0 0
  %529 = vmatpush1.bf16.msra.mxu0 %v520
  %530 = vmatprep.subr.bf16.mxu0 0
  %531 = vmatpush1.bf16.msra.mxu0 0
  %532 = vmatprep.subr.bf16.mxu0 0
  %533 = vmatpush1.bf16.msra.mxu0 0
  %534 = vmatprep.subr.bf16.mxu0 0
  %535 = vmatpush1.bf16.msra.mxu0 0
  %536 = vmatprep.subr.bf16.mxu0 0
  %537 = vmatpush1.bf16.msra.mxu0 0
  %538 = vmatprep.subr.bf16.mxu0 0
  %539 = vmatpush1.bf16.msra.mxu0 0
  %540 = vmatprep.subr.bf16.mxu0 0
  %541 = vmatpush1.bf16.msra.mxu0 0
  %542 = vmatprep.subr.bf16.mxu0 0
  %543 = vmatpush1.bf16.msra.mxu0 0
  %544 = vmatprep.subr.bf16.mxu0 0
  %545 = vmatpush1.bf16.msra.mxu0 0
  %546 = vmatprep.subr.bf16.mxu0 0
  %547 = vmatpush1.bf16.msra.mxu0 0
  %548 = vmatprep.subr.bf16.mxu0 0
  %549 = vmatpush1.bf16.msra.mxu0 0
  %550 = vmatprep.subr.bf16.mxu0 0
  %551 = vmatpush1.bf16.msra.mxu0 0
  %552 = vmatprep.subr.bf16.mxu0 0
  %553 = vmatpush1.bf16.msra.mxu0 0
  %554 = vmatprep.subr.bf16.mxu0 0
  %555 = vmatpush1.bf16.msra.mxu0 0
  %556 = vmatprep.subr.bf16.mxu0 0
  %557 = vmatpush1.bf16.msra.mxu0 0
  %558 = vmatprep.mubr.bf16.mxu0 0
  %559 = vmatmul.mubr.bf16.gmra.mrb[0].mxu0 %v524
  %v560 = vpop.f32.mrb[0].mxu0
  %v561 = vadd.f32 0.0, %v560
  %v562 = vpop.f32.mrb[0].mxu0
  %v563 = vpop.f32.mrb[0].mxu0
  %v564 = vadd.f32 0.0, %v563
  %v565 = vpop.f32.mrb[0].mxu0
  %566 = vdwg.mxu0
  %v567 = vlaneseq
  %v568 = vshrl.u32 %v567, 7
  %v569 = vsub.s32 4, %v568
  %v570 = vrot.slane %v307, %v569
  %v571 = vsub.f32 %v561, %v570
  %v572 = vsub.f32 %v564, %v570
  %v573 = vlaneseq
  %v574 = vshrl.u32 %v573, 7
  %v575 = vsub.s32 5, %v574
  %v576 = vrot.slane %v321, %v575
  %v577 = vmul.f32 %v571, %v576
  %v578 = vmul.f32 %v572, %v576
  %v579 = vlaneseq
  %v580 = vshrl.u32 %v579, 7
  %v581 = vsub.s32 6, %v580
  %v582 = vrot.slane %v36, %v581
  %v583 = vmul.f32 %v577, %v582
  %v584 = vmul.f32 %v578, %v582
  %v585 = vlaneseq
  %v586 = vshrl.u32 %v585, 7
  %v587 = vsub.s32 7, %v586
  %v588 = vrot.slane %v36, %v587
  %v589 = vadd.f32 %v583, %v588
  %v590 = vadd.f32 %v584, %v588
  %591 = vst [vmem:[%s10] sm:$0xff] %v589
  %592 = vst [vmem:[%s10 + $0x8] sm:$0xff] %v590
  // Predicated region
  $region42: #{proxy_encoder_forward.3} parent=0 // pred_check
    _
  $region43: #{proxy_encoder_forward.3} parent=0 // pred_check_branch
    %594 = sbr.rel (0) target = $region45
  $region44: #{proxy_encoder_forward.3} parent=0 // pred_region
    _
  $region45: #{proxy_encoder_forward.3} parent=0 // pred_fallthru
    _
  // Predicated region
  $region46: #{proxy_encoder_forward.3} parent=0 // pred_check
    _
  $region47: #{proxy_encoder_forward.3} parent=0 // pred_check_branch
    %596 = sbr.rel (0) target = $region49
  $region48: #{proxy_encoder_forward.3} parent=0 // pred_region
    _
  $region49: #{proxy_encoder_forward.3} parent=0 // pred_fallthru
    _

</llo_original>
